<compile_context>
chip_gen: v5e
topology: v5e:2x2
jax: 0.10.0
libtpu: 0.0.40
codegen_flags: <defaults>
</compile_context>

<pallas_src>
import functools
import math

import jax
import jax.numpy as jnp
from jax.experimental import pallas as pl
from jax.experimental.pallas import tpu as pltpu

LN_EPS = 1e-5  # PyTorch nn.LayerNorm default


def _ln(x, w, b):
    """LayerNorm over the last axis (f32 math). w/b broadcast against x."""
    m = jnp.mean(x, axis=-1, keepdims=True)
    v = jnp.mean(jnp.square(x - m), axis=-1, keepdims=True)
    return (x - m) * jax.lax.rsqrt(v + LN_EPS) * w + b


def _pooler_kernel(x_ref, lnkw_ref, lnkb_ref, ws_ref, bs_ref, wv_ref, bv_ref,
                   hmask_ref, wo_ref, bo_ref, out_ref):
    Bt, L, Dk = x_ref.shape
    HQ = ws_ref.shape[0]               # n_head * n_queries
    Dm = wv_ref.shape[0]               # d_model
    Q = out_ref.shape[1]
    H = HQ // Q
    mxu = wv_ref.dtype                 # dtype fed to the MXU (bf16 default, f32 option)
    f32 = jnp.float32

    # ln_k over all Bt*L rows of this block at once (f32 math).
    x = x_ref[...].reshape(Bt * L, Dk).astype(f32)
    xn = _ln(x, lnkw_ref[...], lnkb_ref[...]).astype(mxu)            # (Bt*L, Dk)

    # V projection: one lane-dense matmul (Dm output lanes), (1, Dm) sublane-bcast bias.
    v = jnp.einsum('nc,mc->nm', xn, wv_ref[...],
                   preferred_element_type=f32) + bv_ref[...]         # (Bt*L, Dm) f32
    v3 = v.astype(mxu).reshape(Bt, L, Dm)                            # leading-dim split only

    # Scores with the batch-invariant query path folded into Ws / bs on the host:
    #   s[b*L + l, h*Q + q] = xn[b, l, :] . Ws[h*Q + q, :] + bs[h*Q + q]
    s = jnp.einsum('nc,mc->nm', xn, ws_ref[...],
                   preferred_element_type=f32) + bs_ref[...]         # (Bt*L, HQ) f32
    s = jnp.swapaxes(s.reshape(Bt, L, HQ), 1, 2)                     # (Bt, HQ, L)

    # Softmax over the key axis L (canonical lane-axis softmax, f32).
    s = s - jnp.max(s, axis=-1, keepdims=True)
    p = jnp.exp(s)
    p = p * pl.reciprocal(jnp.sum(p, axis=-1, keepdims=True), approx=True)

    # Attention-weighted values for all (head, query) pairs at once, lane-dense over Dm:
    #   o_full[b, h*Q+q, m] = sum_l p[b, h*Q+q, l] * v3[b, l, m]
    o_full = jnp.einsum('bxl,blm->bxm', p.astype(mxu), v3,
                        preferred_element_type=f32)                  # (Bt, HQ, Dm)
    # Keep only the matching-head slice of Dm for each (h, q) row, then reduce heads.
    o = jnp.sum((o_full * hmask_ref[...]).reshape(Bt, H, Q, Dm), axis=1)   # (Bt, Q, Dm)

    # Output projection: single (Bt*Q, Dm) x (Dm, Dm) matmul (K = Dm contraction).
    out = jnp.einsum('nd,md->nm', o.reshape(Bt * Q, Dm).astype(mxu), wo_ref[...],
                     preferred_element_type=f32) + bo_ref[...]       # (Bt*Q, Dm)
    out_ref[...] = out.reshape(Bt, Q, Dm).astype(out_ref.dtype)


def _device_kind():
    try:
        return jax.devices()[0].device_kind.lower()
    except Exception:
        return ""


def attentional_pooler_pallas(x, params, n_head, *, block_b=None,
                              mxu_dtype=jnp.bfloat16):
    B, L, Dk = x.shape
    Q, Dm = params["query"].shape
    H = n_head
    assert Dm % H == 0
    hd = Dm // H
    scale = 1.0 / math.sqrt(hd)
    f32 = jnp.float32
    out_dtype = x.dtype
    mxu_is_bf16 = jnp.dtype(mxu_dtype) == jnp.dtype(jnp.bfloat16)

    # ---- Batch-invariant query path, hoisted and folded into the score weights. ----
    qn = _ln(params["query"].astype(f32), params["lnq_w"].astype(f32),
             params["lnq_b"].astype(f32))
    q = qn @ params["wq"].astype(f32).T + params["bq"].astype(f32)          # (Q, Dm)
    qs = (q * scale).reshape(Q, H, hd).transpose(1, 0, 2)                   # (H, Q, hd)
    wk_h = params["wk"].astype(f32).reshape(H, hd, Dk)
    bk_h = params["bk"].astype(f32).reshape(H, hd)
    ws = jnp.einsum('hqd,hdc->hqc', qs, wk_h).reshape(H * Q, Dk).astype(mxu_dtype)
    bs = jnp.einsum('hqd,hd->hq', qs, bk_h).reshape(1, H * Q).astype(f32)

    # ---- Remaining weights / biases in their native PyTorch layouts (no in-kernel .T). ----
    wv = params["wv"].astype(mxu_dtype)                       # (Dm, Dk)
    bv = params["bv"].astype(f32).reshape(1, Dm)
    wo = params["wo"].astype(mxu_dtype)                       # (Dm, Dm)
    bo = params["bo"].astype(f32).reshape(1, Dm)
    lnk_w = params["lnk_w"].astype(f32).reshape(1, Dk)
    lnk_b = params["lnk_b"].astype(f32).reshape(1, Dk)
    # hmask[h*Q+q, m] = 1 iff output column m belongs to head h.
    hmask = (jnp.repeat(jnp.arange(H), Q)[:, None]
             == (jnp.arange(Dm) // hd)[None, :]).astype(f32)   # (H*Q, Dm)

    # x is the only batch*seq-scaling tensor: feed it in bf16 when the MXU runs bf16.
    x_in = x.astype(jnp.bfloat16) if mxu_is_bf16 else x.astype(f32)

    args = (x_in, lnk_w, lnk_b, ws, bs, wv, bv, hmask, wo, bo)

    # ---- Generation-aware block_b / grid / vmem_limit selection. ----
    weight_bytes = sum(int(a.size) * jnp.dtype(a.dtype).itemsize for a in args[1:])
    x_elt = jnp.dtype(x_in.dtype).itemsize
    out_elt = jnp.dtype(out_dtype).itemsize

    def step_vmem_bytes(bb):
        x_blk = bb * L * Dk * x_elt
        out_blk = bb * Q * Dm * out_elt
        # f32 intermediates: xn/v/s/p/o_full/o/out (rough upper bound).
        inter = (bb * L * (Dk + Dm + H * Q) * 4
                 + bb * H * Q * (Dm + L) * 4
                 + 2 * bb * Q * Dm * 4)
        return 2 * (x_blk + out_blk) + 2 * weight_bytes + inter

    kind = _device_kind()
    is_v7 = "v7" in kind
    # v7x: 64 MiB VMEM and 2 TensorCores -> keep grid >= 2 and a tighter VMEM budget.
    vmem_budget = (56 if is_v7 else 112) * 1024 * 1024
    min_steps = 2 if (is_v7 and B >= 2) else 1

    if block_b is None:
        block_b = 1
        for bb in range(1, B + 1):
            if B % bb == 0 and B // bb >= min_steps and step_vmem_bytes(bb) <= vmem_budget:
                block_b = bb
    assert B % block_b == 0, (B, block_b)

    vmem_limit = int(min(vmem_budget,
                         max(32 * 1024 * 1024,
                             step_vmem_bytes(block_b) + 8 * 1024 * 1024)))

    def _full_spec(a):
        nd = a.ndim
        # NOTE: for CLIP-scale shapes on v7x add pipeline_mode=pl.Buffered(1) here to
        # single-buffer these grid-invariant weights and halve their VMEM footprint.
        return pl.BlockSpec(a.shape, lambda i, _nd=nd: (0,) * _nd)

    in_specs = [pl.BlockSpec((block_b, L, Dk), lambda i: (i, 0, 0))]
    in_specs += [_full_spec(a) for a in args[1:]]
    out_spec = pl.BlockSpec((block_b, Q, Dm), lambda i: (i, 0, 0))

    return pl.pallas_call(
        _pooler_kernel,
        out_shape=jax.ShapeDtypeStruct((B, Q, Dm), out_dtype),
        grid_spec=pltpu.PrefetchScalarGridSpec(
            num_scalar_prefetch=0,
            grid=(B // block_b,),
            in_specs=in_specs,
            out_specs=out_spec,
        ),
        compiler_params=pltpu.CompilerParams(
            dimension_semantics=("parallel",),
            vmem_limit_bytes=vmem_limit,
        ),
    )(*args)


def attentional_pooler_reference(x, params, n_head):
    """Pure-JAX reference mirroring the PyTorch semantics (batch-first I/O)."""
    B, L, Dk = x.shape
    Q, Dm = params["query"].shape
    hd = Dm // n_head
    scale = 1.0 / math.sqrt(hd)

    xn = _ln(x, params["lnk_w"], params["lnk_b"])                 # (B, L, Dk)
    qn = _ln(params["query"], params["lnq_w"], params["lnq_b"])   # (Q, Dm)

    q = qn @ params["wq"].T + params["bq"]                        # (Q, Dm)
    k = xn @ params["wk"].T + params["bk"]                        # (B, L, Dm)
    v = xn @ params["wv"].T + params["bv"]                        # (B, L, Dm)

    qh = q.reshape(Q, n_head, hd).transpose(1, 0, 2)              # (H, Q, hd)
    kh = k.reshape(B, L, n_head, hd).transpose(0, 2, 1, 3)        # (B, H, L, hd)
    vh = v.reshape(B, L, n_head, hd).transpose(0, 2, 1, 3)        # (B, H, L, hd)

    s = jnp.einsum("hqd,bhld->bhql", qh * scale, kh)              # (B, H, Q, L)
    p = jax.nn.softmax(s, axis=-1)
    o = jnp.einsum("bhql,bhld->bhqd", p, vh)                      # (B, H, Q, hd)
    o = o.transpose(0, 2, 1, 3).reshape(B, Q, Dm)
    return o @ params["wo"].T + params["bo"]                      # (B, Q, Dm)


def make_params(key, d_model, context_dim, n_queries):
    ks = jax.random.split(key, 8)
    scale_q = 1.0 / math.sqrt(d_model)
    scale_k = 1.0 / math.sqrt(context_dim)
    return {
        "query": jax.random.normal(ks[0], (n_queries, d_model), jnp.float32),
        "lnq_w": jnp.ones((d_model,), jnp.float32),
        "lnq_b": jnp.zeros((d_model,), jnp.float32),
        "lnk_w": jnp.ones((context_dim,), jnp.float32),
        "lnk_b": jnp.zeros((context_dim,), jnp.float32),
        # q_proj_weight: (d_model, d_model); k/v_proj_weight: (d_model, context_dim)
        "wq": jax.random.normal(ks[1], (d_model, d_model), jnp.float32) * scale_q,
        "wk": jax.random.normal(ks[2], (d_model, context_dim), jnp.float32) * scale_k,
        "wv": jax.random.normal(ks[3], (d_model, context_dim), jnp.float32) * scale_k,
        "bq": jax.random.normal(ks[4], (d_model,), jnp.float32) * 0.02,
        "bk": jax.random.normal(ks[5], (d_model,), jnp.float32) * 0.02,
        "bv": jax.random.normal(ks[6], (d_model,), jnp.float32) * 0.02,
        "wo": jax.random.normal(ks[7], (d_model, d_model), jnp.float32) * scale_q,
        "bo": jnp.zeros((d_model,), jnp.float32),
    }


if __name__ == "__main__":
    # Small shapes consistent with the module's forward, kept lane-dense (d_model = 128):
    #   x: (batch=8, seq_len=16, context_dim=64), d_model=128, n_head=4, n_queries=16
    batch, seq_len, context_dim = 8, 16, 64
    d_model, n_head, n_queries = 128, 4, 16

    key = jax.random.PRNGKey(0)
    k_x, k_p = jax.random.split(key)
    x = jax.random.normal(k_x, (batch, seq_len, context_dim), jnp.float32)
    params = make_params(k_p, d_model, context_dim, n_queries)

    ref = attentional_pooler_reference(x, params, n_head)

    # f32 MXU operands: tight check of the fused-kernel semantics
    # (only approx-reciprocal error remains).
    pooler_f32 = jax.jit(functools.partial(
        attentional_pooler_pallas, n_head=n_head, mxu_dtype=jnp.float32))
    out_f32 = jax.block_until_ready(pooler_f32(x, params))
    assert out_f32.shape == (batch, n_queries, d_model)
    err32 = float(jnp.max(jnp.abs(out_f32 - ref)))
    assert err32 < 5e-2, f"f32 max abs err {err32}"

    # bf16 MXU operands (default, per perf guidance): documented precision choice,
    # checked with a correspondingly loose tolerance.
    pooler_bf16 = jax.jit(functools.partial(
        attentional_pooler_pallas, n_head=n_head, mxu_dtype=jnp.bfloat16))
    out_bf16 = jax.block_until_ready(pooler_bf16(x, params))
    assert out_bf16.shape == (batch, n_queries, d_model)
    errbf = float(jnp.max(jnp.abs(out_bf16 - ref)))
    assert errbf < 3e-1, f"bf16 max abs err {errbf}"

    print("KERNEL_OK")
</pallas_src>

<mosaic_0001>
module attributes {stable_mosaic.version = 11 : i64} {
  func.func @_pooler_kernel(%arg0: i32, %arg1: memref<8x16x64xf32, #tpu.memory_space<vmem>>, %arg2: memref<1x64xf32, #tpu.memory_space<vmem>>, %arg3: memref<1x64xf32, #tpu.memory_space<vmem>>, %arg4: memref<64x64xf32, #tpu.memory_space<vmem>>, %arg5: memref<1x64xf32, #tpu.memory_space<vmem>>, %arg6: memref<128x64xf32, #tpu.memory_space<vmem>>, %arg7: memref<1x128xf32, #tpu.memory_space<vmem>>, %arg8: memref<64x128xf32, #tpu.memory_space<vmem>>, %arg9: memref<128x128xf32, #tpu.memory_space<vmem>>, %arg10: memref<1x128xf32, #tpu.memory_space<vmem>>, %arg11: memref<8x16x128xf32, #tpu.memory_space<vmem>>) attributes {dimension_semantics = [#tpu.dimension_semantics<parallel>], iteration_bounds = array<i64: 1>, scalar_prefetch = 0 : i64, scratch_operands = 0 : i64, tpu.core_type = #tpu.core_type<tc>, window_params = [{transform_indices = @transform_0, window_bounds = array<i64: 8, 16, 64>}, {pipeline_mode = #tpu.pipeline_mode<synchronous>, transform_indices = @transform_1, window_bounds = array<i64: 1, 64>}, {pipeline_mode = #tpu.pipeline_mode<synchronous>, transform_indices = @transform_2, window_bounds = array<i64: 1, 64>}, {pipeline_mode = #tpu.pipeline_mode<synchronous>, transform_indices = @transform_3, window_bounds = array<i64: 64, 64>}, {pipeline_mode = #tpu.pipeline_mode<synchronous>, transform_indices = @transform_4, window_bounds = array<i64: 1, 64>}, {pipeline_mode = #tpu.pipeline_mode<synchronous>, transform_indices = @transform_5, window_bounds = array<i64: 128, 64>}, {pipeline_mode = #tpu.pipeline_mode<synchronous>, transform_indices = @transform_6, window_bounds = array<i64: 1, 128>}, {pipeline_mode = #tpu.pipeline_mode<synchronous>, transform_indices = @transform_7, window_bounds = array<i64: 64, 128>}, {pipeline_mode = #tpu.pipeline_mode<synchronous>, transform_indices = @transform_8, window_bounds = array<i64: 128, 128>}, {pipeline_mode = #tpu.pipeline_mode<synchronous>, transform_indices = @transform_9, window_bounds = array<i64: 1, 128>}, {transform_indices = @transform_10, window_bounds = array<i64: 8, 16, 128>}]} {
    %c0 = arith.constant 0 : index
    %c0_0 = arith.constant 0 : index
    %c0_1 = arith.constant 0 : index
    %0 = vector.load %arg1[%c0, %c0_0, %c0_1] : memref<8x16x64xf32, #tpu.memory_space<vmem>>, vector<8x16x64xf32>
    %1 = vector.shape_cast %0 : vector<8x16x64xf32> to vector<128x64xf32>
    %c0_2 = arith.constant 0 : index
    %c0_3 = arith.constant 0 : index
    %2 = vector.load %arg2[%c0_2, %c0_3] : memref<1x64xf32, #tpu.memory_space<vmem>>, vector<1x64xf32>
    %c0_4 = arith.constant 0 : index
    %c0_5 = arith.constant 0 : index
    %3 = vector.load %arg3[%c0_4, %c0_5] : memref<1x64xf32, #tpu.memory_space<vmem>>, vector<1x64xf32>
    %cst = arith.constant dense<0.000000e+00> : vector<128xf32>
    %4 = vector.multi_reduction <add>, %1, %cst [1] : vector<128x64xf32> to vector<128xf32>
    %5 = vector.shape_cast %4 : vector<128xf32> to vector<128x1xf32>
    %cst_6 = arith.constant 6.400000e+01 : f32
    %6 = vector.broadcast %cst_6 : f32 to vector<128x1xf32>
    %7 = arith.divf %5, %6 : vector<128x1xf32>
    %8 = vector.broadcast %7 : vector<128x1xf32> to vector<128x64xf32>
    %9 = arith.subf %1, %8 : vector<128x64xf32>
    %10 = arith.mulf %9, %9 : vector<128x64xf32>
    %cst_7 = arith.constant dense<0.000000e+00> : vector<128xf32>
    %11 = vector.multi_reduction <add>, %10, %cst_7 [1] : vector<128x64xf32> to vector<128xf32>
    %12 = vector.shape_cast %11 : vector<128xf32> to vector<128x1xf32>
    %cst_8 = arith.constant 6.400000e+01 : f32
    %13 = vector.broadcast %cst_8 : f32 to vector<128x1xf32>
    %14 = arith.divf %12, %13 : vector<128x1xf32>
    %15 = vector.broadcast %7 : vector<128x1xf32> to vector<128x64xf32>
    %16 = arith.subf %1, %15 : vector<128x64xf32>
    %cst_9 = arith.constant 9.99999974E-6 : f32
    %17 = vector.broadcast %cst_9 : f32 to vector<128x1xf32>
    %18 = arith.addf %14, %17 : vector<128x1xf32>
    %19 = math.rsqrt %18 : vector<128x1xf32>
    %20 = vector.broadcast %19 : vector<128x1xf32> to vector<128x64xf32>
    %21 = arith.mulf %16, %20 : vector<128x64xf32>
    %22 = vector.broadcast %2 : vector<1x64xf32> to vector<128x64xf32>
    %23 = arith.mulf %21, %22 : vector<128x64xf32>
    %24 = vector.broadcast %3 : vector<1x64xf32> to vector<128x64xf32>
    %25 = arith.addf %23, %24 : vector<128x64xf32>
    %c0_10 = arith.constant 0 : index
    %c0_11 = arith.constant 0 : index
    %26 = vector.load %arg6[%c0_10, %c0_11] : memref<128x64xf32, #tpu.memory_space<vmem>>, vector<128x64xf32>
    "tpu.trace_start"() <{level = 10 : i32, message = "nc,mc->nm"}> : () -> ()
    %cst_12 = arith.constant dense<0.000000e+00> : vector<128x128xf32>
    %27 = tpu.matmul %25, %26, %cst_12 {dimension_numbers = #tpu.dot_dimension_numbers<[1], [1], [0], [0], [0, 0, 1, 0], [], []>} : vector<128x64xf32>, vector<128x64xf32>, vector<128x128xf32> -> vector<128x128xf32>
    "tpu.trace_stop"() : () -> ()
    %c0_13 = arith.constant 0 : index
    %c0_14 = arith.constant 0 : index
    %28 = vector.load %arg7[%c0_13, %c0_14] : memref<1x128xf32, #tpu.memory_space<vmem>>, vector<1x128xf32>
    %29 = vector.broadcast %28 : vector<1x128xf32> to vector<128x128xf32>
    %30 = arith.addf %27, %29 : vector<128x128xf32>
    %31 = vector.shape_cast %30 : vector<128x128xf32> to vector<8x16x128xf32>
    %c0_15 = arith.constant 0 : index
    %c0_16 = arith.constant 0 : index
    %32 = vector.load %arg4[%c0_15, %c0_16] : memref<64x64xf32, #tpu.memory_space<vmem>>, vector<64x64xf32>
    "tpu.trace_start"() <{level = 10 : i32, message = "nc,mc->nm"}> : () -> ()
    %cst_17 = arith.constant dense<0.000000e+00> : vector<128x64xf32>
    %33 = tpu.matmul %25, %32, %cst_17 {dimension_numbers = #tpu.dot_dimension_numbers<[1], [1], [0], [0], [0, 0, 1, 0], [], []>} : vector<128x64xf32>, vector<64x64xf32>, vector<128x64xf32> -> vector<128x64xf32>
    "tpu.trace_stop"() : () -> ()
    %c0_18 = arith.constant 0 : index
    %c0_19 = arith.constant 0 : index
    %34 = vector.load %arg5[%c0_18, %c0_19] : memref<1x64xf32, #tpu.memory_space<vmem>>, vector<1x64xf32>
    %35 = vector.broadcast %34 : vector<1x64xf32> to vector<128x64xf32>
    %36 = arith.addf %33, %35 : vector<128x64xf32>
    %37 = vector.shape_cast %36 : vector<128x64xf32> to vector<8x16x64xf32>
    %38 = tpu.transpose %37, [0, 2, 1] : vector<8x16x64xf32> -> vector<8x64x16xf32>
    %cst_20 = arith.constant dense<0xFF800000> : vector<8x64xf32>
    %39 = vector.multi_reduction <maximumf>, %38, %cst_20 [2] : vector<8x64x16xf32> to vector<8x64xf32>
    %40 = vector.shape_cast %39 : vector<8x64xf32> to vector<8x64x1xf32>
    %41 = vector.broadcast %40 : vector<8x64x1xf32> to vector<8x64x16xf32>
    %42 = arith.subf %38, %41 : vector<8x64x16xf32>
    %43 = math.exp %42 : vector<8x64x16xf32>
    %cst_21 = arith.constant dense<0.000000e+00> : vector<8x64xf32>
    %44 = vector.multi_reduction <add>, %43, %cst_21 [2] : vector<8x64x16xf32> to vector<8x64xf32>
    %45 = vector.shape_cast %44 : vector<8x64xf32> to vector<8x64x1xf32>
    %46 = tpu.reciprocal %45 {approx = true} : vector<8x64x1xf32> -> vector<8x64x1xf32>
    %47 = vector.broadcast %46 : vector<8x64x1xf32> to vector<8x64x16xf32>
    %48 = arith.mulf %43, %47 : vector<8x64x16xf32>
    "tpu.trace_start"() <{level = 10 : i32, message = "bxl,blm->bxm"}> : () -> ()
    %cst_22 = arith.constant dense<0.000000e+00> : vector<8x64x128xf32>
    %49 = tpu.matmul %48, %31, %cst_22 {dimension_numbers = #tpu.dot_dimension_numbers<[2], [1], [1], [2], [0, 0, 0, 1, 1, 2], [0], [0]>} : vector<8x64x16xf32>, vector<8x16x128xf32>, vector<8x64x128xf32> -> vector<8x64x128xf32>
    "tpu.trace_stop"() : () -> ()
    %c0_23 = arith.constant 0 : index
    %c0_24 = arith.constant 0 : index
    %50 = vector.load %arg8[%c0_23, %c0_24] : memref<64x128xf32, #tpu.memory_space<vmem>>, vector<64x128xf32>
    %51 = vector.shape_cast %50 : vector<64x128xf32> to vector<1x64x128xf32>
    %52 = vector.broadcast %51 : vector<1x64x128xf32> to vector<8x64x128xf32>
    %53 = arith.mulf %49, %52 : vector<8x64x128xf32>
    %54 = vector.shape_cast %53 : vector<8x64x128xf32> to vector<8x4x16x128xf32>
    %cst_25 = arith.constant dense<0.000000e+00> : vector<8x16x128xf32>
    %55 = vector.multi_reduction <add>, %54, %cst_25 [1] : vector<8x4x16x128xf32> to vector<8x16x128xf32>
    %56 = vector.shape_cast %55 : vector<8x16x128xf32> to vector<128x128xf32>
    %c0_26 = arith.constant 0 : index
    %c0_27 = arith.constant 0 : index
    %57 = vector.load %arg9[%c0_26, %c0_27] : memref<128x128xf32, #tpu.memory_space<vmem>>, vector<128x128xf32>
    "tpu.trace_start"() <{level = 10 : i32, message = "nd,md->nm"}> : () -> ()
    %cst_28 = arith.constant dense<0.000000e+00> : vector<128x128xf32>
    %58 = tpu.matmul %56, %57, %cst_28 {dimension_numbers = #tpu.dot_dimension_numbers<[1], [1], [0], [0], [0, 0, 1, 0], [], []>} : vector<128x128xf32>, vector<128x128xf32>, vector<128x128xf32> -> vector<128x128xf32>
    "tpu.trace_stop"() : () -> ()
    %c0_29 = arith.constant 0 : index
    %c0_30 = arith.constant 0 : index
    %59 = vector.load %arg10[%c0_29, %c0_30] : memref<1x128xf32, #tpu.memory_space<vmem>>, vector<1x128xf32>
    %60 = vector.broadcast %59 : vector<1x128xf32> to vector<128x128xf32>
    %61 = arith.addf %58, %60 : vector<128x128xf32>
    %62 = vector.shape_cast %61 : vector<128x128xf32> to vector<8x16x128xf32>
    %c0_31 = arith.constant 0 : index
    %c0_32 = arith.constant 0 : index
    %c0_33 = arith.constant 0 : index
    %63 = vector.load %arg11[%c0_31, %c0_32, %c0_33] : memref<8x16x128xf32, #tpu.memory_space<vmem>>, vector<8x16x128xf32>
    tpu.vector_store %arg11[%c0_31, %c0_32, %c0_33], %62 {strides = array<i32>} : memref<8x16x128xf32, #tpu.memory_space<vmem>>, vector<8x16x128xf32>,
    return
  }
  func.func @transform_0(%arg0: i32) -> (i32, i32, i32) {
    %c0_i32 = arith.constant 0 : i32
    %c0_i32_0 = arith.constant 0 : i32
    %c0_i32_1 = arith.constant 0 : i32
    return %arg0, %c0_i32, %c0_i32_0 : i32, i32, i32
  }
  func.func @transform_1(%arg0: i32) -> (i32, i32) {
    %c0_i32 = arith.constant 0 : i32
    %c0_i32_0 = arith.constant 0 : i32
    %c0_i32_1 = arith.constant 0 : i32
    return %c0_i32, %c0_i32_0 : i32, i32
  }
  func.func @transform_2(%arg0: i32) -> (i32, i32) {
    %c0_i32 = arith.constant 0 : i32
    %c0_i32_0 = arith.constant 0 : i32
    %c0_i32_1 = arith.constant 0 : i32
    return %c0_i32, %c0_i32_0 : i32, i32
  }
  func.func @transform_3(%arg0: i32) -> (i32, i32) {
    %c0_i32 = arith.constant 0 : i32
    %c0_i32_0 = arith.constant 0 : i32
    %c0_i32_1 = arith.constant 0 : i32
    return %c0_i32, %c0_i32_0 : i32, i32
  }
  func.func @transform_4(%arg0: i32) -> (i32, i32) {
    %c0_i32 = arith.constant 0 : i32
    %c0_i32_0 = arith.constant 0 : i32
    %c0_i32_1 = arith.constant 0 : i32
    return %c0_i32, %c0_i32_0 : i32, i32
  }
  func.func @transform_5(%arg0: i32) -> (i32, i32) {
    %c0_i32 = arith.constant 0 : i32
    %c0_i32_0 = arith.constant 0 : i32
    %c0_i32_1 = arith.constant 0 : i32
    return %c0_i32, %c0_i32_0 : i32, i32
  }
  func.func @transform_6(%arg0: i32) -> (i32, i32) {
    %c0_i32 = arith.constant 0 : i32
    %c0_i32_0 = arith.constant 0 : i32
    %c0_i32_1 = arith.constant 0 : i32
    return %c0_i32, %c0_i32_0 : i32, i32
  }
  func.func @transform_7(%arg0: i32) -> (i32, i32) {
    %c0_i32 = arith.constant 0 : i32
    %c0_i32_0 = arith.constant 0 : i32
    %c0_i32_1 = arith.constant 0 : i32
    return %c0_i32, %c0_i32_0 : i32, i32
  }
  func.func @transform_8(%arg0: i32) -> (i32, i32) {
    %c0_i32 = arith.constant 0 : i32
    %c0_i32_0 = arith.constant 0 : i32
    %c0_i32_1 = arith.constant 0 : i32
    return %c0_i32, %c0_i32_0 : i32, i32
  }
  func.func @transform_9(%arg0: i32) -> (i32, i32) {
    %c0_i32 = arith.constant 0 : i32
    %c0_i32_0 = arith.constant 0 : i32
    %c0_i32_1 = arith.constant 0 : i32
    return %c0_i32, %c0_i32_0 : i32, i32
  }
  func.func @transform_10(%arg0: i32) -> (i32, i32, i32) {
    %c0_i32 = arith.constant 0 : i32
    %c0_i32_0 = arith.constant 0 : i32
    %c0_i32_1 = arith.constant 0 : i32
    return %arg0, %c0_i32, %c0_i32_0 : i32, i32, i32
  }
}

</mosaic_0001>

<llo_original>
// kernel: eq.8
$region0: #{eq.8}
  %s0 = inlined_call_operand.vmem [shape: s32[4,16], index: 0, kind: input, shape index: {}]
  %s1 = inlined_call_operand.vmem [shape: s32[64], index: 1, kind: output, shape index: {}]
  $region1: #{eq.8} parent=0
    #allocation0 [shape = 'u8[4096]{0}', space=vmem, size = 0x1000, scoped, tag = 'scoped mem for output reshape']
    #allocation1 [shape = 'u8[4096]{0}', space=vmem, size = 0x1000, scoped, tag = 'scoped mem for input reshape']
    %s3 = ssub.s32 16, 1
    %v4 = vld [vmem:[%s0] sm:%s3]
    %5 = vst [vmem:[#allocation1] sm:%s3] %v4
    %v6 = vld [vmem:[#allocation1] sm:$0x1]
    %vm7 = vcmask 130048
    %8 = vst.msk [vmem:[#allocation0] sm:$0x1] %vm7, %v6
    %s9 = scalar_lea.vmem [#allocation1], 3
    %v10 = vld [vmem:[%s9] sm:$0x1]
    %11 = vrot.lane.b32.xlu0 %v10, 48
    %v12 = vpop.permute.xlu0 %11
    %vm13 = vcmask 523648
    %14 = vst.msk [vmem:[#allocation0] sm:$0x1] %vm13, %v12
    %s15 = scalar_lea.vmem [#allocation1], 2
    %v16 = vld [vmem:[%s15] sm:$0x1]
    %17 = vrot.lane.b32.xlu0 %v16, 32
    %v18 = vpop.permute.xlu0 %17
    %vm19 = vcmask 392448
    %20 = vst.msk [vmem:[#allocation0] sm:$0x1] %vm19, %v18
    %s21 = scalar_lea.vmem [#allocation1], 1
    %v22 = vld [vmem:[%s21] sm:$0x1]
    %23 = vrot.lane.b32.xlu0 %v22, 16
    %v24 = vpop.permute.xlu0 %23
    %vm25 = vcmask 261248
    %26 = vst.msk [vmem:[#allocation0] sm:$0x1] %vm25, %v24
    %s28 = ssub.s32 2, 1
    %v29 = vld [vmem:[#allocation0] sm:%s28]
    %s31 = ssub.s32 2, 1
    %32 = vst [vmem:[%s1] sm:%s31] %v29

// kernel: attentional_pooler_pallas.1
$region0: #{attentional_pooler_pallas.1}
  #allocation0 [shape = 'u32[]', space=smem, size = 0x4, offset = 0x4, fixed_abs, tag = 'smem constant byte address 0x4 - core index']
  #allocation1 [shape = 'u32[72,128]{1,0:T(1,128)}', space=vmem, size = 0x9000, scoped, tag = 'internal scratch']
  %s0 = inlined_call_operand.vmem [shape: f32[8,16,64], index: 0, kind: input, shape index: {}]
  %s1 = inlined_call_operand.vmem [shape: f32[1,64], index: 1, kind: input, shape index: {}]
  %s2 = inlined_call_operand.vmem [shape: f32[1,64], index: 2, kind: input, shape index: {}]
  %s3 = inlined_call_operand.vmem [shape: f32[64,64], index: 3, kind: input, shape index: {}]
  %s4 = inlined_call_operand.vmem [shape: f32[1,64], index: 4, kind: input, shape index: {}]
  %s5 = inlined_call_operand.vmem [shape: f32[128,64], index: 5, kind: input, shape index: {}]
  %s6 = inlined_call_operand.vmem [shape: f32[1,128], index: 6, kind: input, shape index: {}]
  %s7 = inlined_call_operand.vmem [shape: f32[64,128], index: 7, kind: input, shape index: {}]
  %s8 = inlined_call_operand.vmem [shape: f32[128,128], index: 8, kind: input, shape index: {}]
  %s9 = inlined_call_operand.vmem [shape: f32[1,128], index: 9, kind: input, shape index: {}]
  %s10 = inlined_call_operand.hbm [shape: f32[8,16,128], index: 10, kind: output, shape index: {}]
  %s11 = sld [smem:[#allocation0]]
  $region50: #{attentional_pooler_pallas.1} parent=0
    _
  %s13 = ssub.s32 1, %s11
  %s14 = scalar_select 0, %s13, %s11
  $region1: #{attentional_pooler_pallas.1} parent=0
    #allocation2 [shape = 'u8[65536]{0}', space=vmem, size = 0x10000, scoped, tag = 'output window, operand 0, single buffered']
    #allocation3 [shape = 's32[1]{0}', space=sflag, size = 0x4, scoped, tag = 'scoped memory for attentional_pooler_pallas.1']
    %15 = vsyncpa [#allocation3], 0
    // Predicated region
    $region2: #{attentional_pooler_pallas.1} parent=1 // pred_check
      _
    $region3: #{attentional_pooler_pallas.1} parent=1 // pred_check_branch
      %17 = sbr.rel (0) target = $region5
    $region4: #{attentional_pooler_pallas.1} parent=1 // pred_region
      _
    $region5: #{attentional_pooler_pallas.1} parent=1 // pred_fallthru
      _
    // Predicated region
    $region6: #{attentional_pooler_pallas.1} parent=1 // pred_check
      _
    $region7: #{attentional_pooler_pallas.1} parent=1 // pred_check_branch
      %19 = sbr.rel (0) target = $region9
    $region8: #{attentional_pooler_pallas.1} parent=1 // pred_region
      _
    $region9: #{attentional_pooler_pallas.1} parent=1 // pred_fallthru
      _
    // Predicated region
    $region10: #{attentional_pooler_pallas.1} parent=1 // pred_check
      _
    $region11: #{attentional_pooler_pallas.1} parent=1 // pred_check_branch
      %21 = sbr.rel (0) target = $region13
    $region12: #{attentional_pooler_pallas.1} parent=1 // pred_region
      _
    $region13: #{attentional_pooler_pallas.1} parent=1 // pred_fallthru
      _
    // Predicated region
    $region14: #{attentional_pooler_pallas.1} parent=1 // pred_check
      _
    $region15: #{attentional_pooler_pallas.1} parent=1 // pred_check_branch
      %23 = sbr.rel (0) target = $region17
    $region16: #{attentional_pooler_pallas.1} parent=1 // pred_region
      _
    $region17: #{attentional_pooler_pallas.1} parent=1 // pred_fallthru
      _
    // Predicated region
    $region18: #{attentional_pooler_pallas.1} parent=1 // pred_check
      _
    $region19: #{attentional_pooler_pallas.1} parent=1 // pred_check_branch
      %25 = sbr.rel (0) target = $region21
    $region20: #{attentional_pooler_pallas.1} parent=1 // pred_region
      _
    $region21: #{attentional_pooler_pallas.1} parent=1 // pred_fallthru
      _
    // Predicated region
    $region22: #{attentional_pooler_pallas.1} parent=1 // pred_check
      _
    $region23: #{attentional_pooler_pallas.1} parent=1 // pred_check_branch
      %27 = sbr.rel (0) target = $region25
    $region24: #{attentional_pooler_pallas.1} parent=1 // pred_region
      _
    $region25: #{attentional_pooler_pallas.1} parent=1 // pred_fallthru
      _
    // Predicated region
    $region26: #{attentional_pooler_pallas.1} parent=1 // pred_check
      _
    $region27: #{attentional_pooler_pallas.1} parent=1 // pred_check_branch
      %29 = sbr.rel (0) target = $region29
    $region28: #{attentional_pooler_pallas.1} parent=1 // pred_region
      _
    $region29: #{attentional_pooler_pallas.1} parent=1 // pred_fallthru
      _
    // Predicated region
    $region30: #{attentional_pooler_pallas.1} parent=1 // pred_check
      _
    $region31: #{attentional_pooler_pallas.1} parent=1 // pred_check_branch
      %31 = sbr.rel (0) target = $region33
    $region32: #{attentional_pooler_pallas.1} parent=1 // pred_region
      _
    $region33: #{attentional_pooler_pallas.1} parent=1 // pred_fallthru
      _
    // Predicated region
    $region34: #{attentional_pooler_pallas.1} parent=1 // pred_check
      _
    $region35: #{attentional_pooler_pallas.1} parent=1 // pred_check_branch
      %33 = sbr.rel (0) target = $region37
    $region36: #{attentional_pooler_pallas.1} parent=1 // pred_region
      _
    $region37: #{attentional_pooler_pallas.1} parent=1 // pred_fallthru
      _
    // Predicated region
    $region38: #{attentional_pooler_pallas.1} parent=1 // pred_check
      _
    $region39: #{attentional_pooler_pallas.1} parent=1 // pred_check_branch
      %35 = sbr.rel (0) target = $region41
    $region40: #{attentional_pooler_pallas.1} parent=1 // pred_region
      _
    $region41: #{attentional_pooler_pallas.1} parent=1 // pred_fallthru
      _
    %v36 = vld [vmem:[%s0] sm:$0xff]
    %v37 = vld [vmem:[%s0 + $0x8] sm:$0xff]
    %v38 = vld [vmem:[%s0 + $0x10] sm:$0xff]
    %v39 = vld [vmem:[%s0 + $0x18] sm:$0xff]
    %v40 = vld [vmem:[%s0 + $0x20] sm:$0xff]
    %v41 = vld [vmem:[%s0 + $0x28] sm:$0xff]
    %v42 = vld [vmem:[%s0 + $0x30] sm:$0xff]
    %v43 = vld [vmem:[%s0 + $0x38] sm:$0xff]
    %v44 = vld [vmem:[%s0 + $0x40] sm:$0xff]
    %v45 = vld [vmem:[%s0 + $0x48] sm:$0xff]
    %v46 = vld [vmem:[%s0 + $0x50] sm:$0xff]
    %v47 = vld [vmem:[%s0 + $0x58] sm:$0xff]
    %v48 = vld [vmem:[%s0 + $0x60] sm:$0xff]
    %v49 = vld [vmem:[%s0 + $0x68] sm:$0xff]
    %v50 = vld [vmem:[%s0 + $0x70] sm:$0xff]
    %v51 = vld [vmem:[%s0 + $0x78] sm:$0xff]
    %v52 = vld [vmem:[%s1] sm:$0x1]
    %v53 = vld [vmem:[%s2] sm:$0x1]
    %vm54 = vcmask 523264
    %v55 = vsel %vm54, %v36, 0.0
    %56 = vadd.xlane.f32.xlu0 %v55
    %v57 = vpop.xlane.xlu0 %56
    %v58 = vsel %vm54, %v37, 0.0
    %59 = vadd.xlane.f32.xlu0 %v58
    %v60 = vpop.xlane.xlu0 %59
    %v61 = vsel %vm54, %v38, 0.0
    %62 = vadd.xlane.f32.xlu0 %v61
    %v63 = vpop.xlane.xlu0 %62
    %v64 = vsel %vm54, %v39, 0.0
    %65 = vadd.xlane.f32.xlu0 %v64
    %v66 = vpop.xlane.xlu0 %65
    %v67 = vsel %vm54, %v40, 0.0
    %68 = vadd.xlane.f32.xlu0 %v67
    %v69 = vpop.xlane.xlu0 %68
    %v70 = vsel %vm54, %v41, 0.0
    %71 = vadd.xlane.f32.xlu0 %v70
    %v72 = vpop.xlane.xlu0 %71
    %v73 = vsel %vm54, %v42, 0.0
    %74 = vadd.xlane.f32.xlu0 %v73
    %v75 = vpop.xlane.xlu0 %74
    %v76 = vsel %vm54, %v43, 0.0
    %77 = vadd.xlane.f32.xlu0 %v76
    %v78 = vpop.xlane.xlu0 %77
    %v79 = vsel %vm54, %v44, 0.0
    %80 = vadd.xlane.f32.xlu0 %v79
    %v81 = vpop.xlane.xlu0 %80
    %v82 = vsel %vm54, %v45, 0.0
    %83 = vadd.xlane.f32.xlu0 %v82
    %v84 = vpop.xlane.xlu0 %83
    %v85 = vsel %vm54, %v46, 0.0
    %86 = vadd.xlane.f32.xlu0 %v85
    %v87 = vpop.xlane.xlu0 %86
    %v88 = vsel %vm54, %v47, 0.0
    %89 = vadd.xlane.f32.xlu0 %v88
    %v90 = vpop.xlane.xlu0 %89
    %v91 = vsel %vm54, %v48, 0.0
    %92 = vadd.xlane.f32.xlu0 %v91
    %v93 = vpop.xlane.xlu0 %92
    %v94 = vsel %vm54, %v49, 0.0
    %95 = vadd.xlane.f32.xlu0 %v94
    %v96 = vpop.xlane.xlu0 %95
    %v97 = vsel %vm54, %v50, 0.0
    %98 = vadd.xlane.f32.xlu0 %v97
    %v99 = vpop.xlane.xlu0 %98
    %v100 = vsel %vm54, %v51, 0.0
    %101 = vadd.xlane.f32.xlu0 %v100
    %v102 = vpop.xlane.xlu0 %101
    %v103 = vrcp.pop 64.0
    %v104 = vmul.f32 64.0, %v103
    %v105 = vsub.f32 1.0, %v104
    %v106 = vmul.f32 %v103, %v105
    %v107 = vadd.f32 %v103, %v106
    %vm108 = vweird.f32 %v103
    %v109 = vsel %vm108, %v103, %v107
    %v110 = vmul.f32 %v57, %v109
    %v111 = vmul.f32 %v60, %v109
    %v112 = vmul.f32 %v63, %v109
    %v113 = vmul.f32 %v66, %v109
    %v114 = vmul.f32 %v69, %v109
    %v115 = vmul.f32 %v72, %v109
    %v116 = vmul.f32 %v75, %v109
    %v117 = vmul.f32 %v78, %v109
    %v118 = vmul.f32 %v81, %v109
    %v119 = vmul.f32 %v84, %v109
    %v120 = vmul.f32 %v87, %v109
    %v121 = vmul.f32 %v90, %v109
    %v122 = vmul.f32 %v93, %v109
    %v123 = vmul.f32 %v96, %v109
    %v124 = vmul.f32 %v99, %v109
    %v125 = vmul.f32 %v102, %v109
    %v126 = vsub.f32 %v36, %v110
    %v127 = vsub.f32 %v37, %v111
    %v128 = vsub.f32 %v38, %v112
    %v129 = vsub.f32 %v39, %v113
    %v130 = vsub.f32 %v40, %v114
    %v131 = vsub.f32 %v41, %v115
    %v132 = vsub.f32 %v42, %v116
    %v133 = vsub.f32 %v43, %v117
    %v134 = vsub.f32 %v44, %v118
    %v135 = vsub.f32 %v45, %v119
    %v136 = vsub.f32 %v46, %v120
    %v137 = vsub.f32 %v47, %v121
    %v138 = vsub.f32 %v48, %v122
    %v139 = vsub.f32 %v49, %v123
    %v140 = vsub.f32 %v50, %v124
    %v141 = vsub.f32 %v51, %v125
    %v142 = vmul.f32 %v126, %v126
    %v143 = vmul.f32 %v127, %v127
    %v144 = vmul.f32 %v128, %v128
    %v145 = vmul.f32 %v129, %v129
    %v146 = vmul.f32 %v130, %v130
    %v147 = vmul.f32 %v131, %v131
    %v148 = vmul.f32 %v132, %v132
    %v149 = vmul.f32 %v133, %v133
    %v150 = vmul.f32 %v134, %v134
    %v151 = vmul.f32 %v135, %v135
    %v152 = vmul.f32 %v136, %v136
    %v153 = vmul.f32 %v137, %v137
    %v154 = vmul.f32 %v138, %v138
    %v155 = vmul.f32 %v139, %v139
    %v156 = vmul.f32 %v140, %v140
    %v157 = vmul.f32 %v141, %v141
    %v158 = vsel %vm54, %v142, 0.0
    %159 = vadd.xlane.f32.xlu0 %v158
    %v160 = vpop.xlane.xlu0 %159
    %v161 = vsel %vm54, %v143, 0.0
    %162 = vadd.xlane.f32.xlu0 %v161
    %v163 = vpop.xlane.xlu0 %162
    %v164 = vsel %vm54, %v144, 0.0
    %165 = vadd.xlane.f32.xlu0 %v164
    %v166 = vpop.xlane.xlu0 %165
    %v167 = vsel %vm54, %v145, 0.0
    %168 = vadd.xlane.f32.xlu0 %v167
    %v169 = vpop.xlane.xlu0 %168
    %v170 = vsel %vm54, %v146, 0.0
    %171 = vadd.xlane.f32.xlu0 %v170
    %v172 = vpop.xlane.xlu0 %171
    %v173 = vsel %vm54, %v147, 0.0
    %174 = vadd.xlane.f32.xlu0 %v173
    %v175 = vpop.xlane.xlu0 %174
    %v176 = vsel %vm54, %v148, 0.0
    %177 = vadd.xlane.f32.xlu0 %v176
    %v178 = vpop.xlane.xlu0 %177
    %v179 = vsel %vm54, %v149, 0.0
    %180 = vadd.xlane.f32.xlu0 %v179
    %v181 = vpop.xlane.xlu0 %180
    %v182 = vsel %vm54, %v150, 0.0
    %183 = vadd.xlane.f32.xlu0 %v182
    %v184 = vpop.xlane.xlu0 %183
    %v185 = vsel %vm54, %v151, 0.0
    %186 = vadd.xlane.f32.xlu0 %v185
    %v187 = vpop.xlane.xlu0 %186
    %v188 = vsel %vm54, %v152, 0.0
    %189 = vadd.xlane.f32.xlu0 %v188
    %v190 = vpop.xlane.xlu0 %189
    %v191 = vsel %vm54, %v153, 0.0
    %192 = vadd.xlane.f32.xlu0 %v191
    %v193 = vpop.xlane.xlu0 %192
    %v194 = vsel %vm54, %v154, 0.0
    %195 = vadd.xlane.f32.xlu0 %v194
    %v196 = vpop.xlane.xlu0 %195
    %v197 = vsel %vm54, %v155, 0.0
    %198 = vadd.xlane.f32.xlu0 %v197
    %v199 = vpop.xlane.xlu0 %198
    %v200 = vsel %vm54, %v156, 0.0
    %201 = vadd.xlane.f32.xlu0 %v200
    %v202 = vpop.xlane.xlu0 %201
    %v203 = vsel %vm54, %v157, 0.0
    %204 = vadd.xlane.f32.xlu0 %v203
    %v205 = vpop.xlane.xlu0 %204
    %v206 = vmul.f32 %v160, %v109
    %v207 = vmul.f32 %v163, %v109
    %v208 = vmul.f32 %v166, %v109
    %v209 = vmul.f32 %v169, %v109
    %v210 = vmul.f32 %v172, %v109
    %v211 = vmul.f32 %v175, %v109
    %v212 = vmul.f32 %v178, %v109
    %v213 = vmul.f32 %v181, %v109
    %v214 = vmul.f32 %v184, %v109
    %v215 = vmul.f32 %v187, %v109
    %v216 = vmul.f32 %v190, %v109
    %v217 = vmul.f32 %v193, %v109
    %v218 = vmul.f32 %v196, %v109
    %v219 = vmul.f32 %v199, %v109
    %v220 = vmul.f32 %v202, %v109
    %v221 = vmul.f32 %v205, %v109
    %v222 = vadd.f32 %v206, 1e-05
    %v223 = vadd.f32 %v207, 1e-05
    %v224 = vadd.f32 %v208, 1e-05
    %v225 = vadd.f32 %v209, 1e-05
    %v226 = vadd.f32 %v210, 1e-05
    %v227 = vadd.f32 %v211, 1e-05
    %v228 = vadd.f32 %v212, 1e-05
    %v229 = vadd.f32 %v213, 1e-05
    %v230 = vadd.f32 %v214, 1e-05
    %v231 = vadd.f32 %v215, 1e-05
    %v232 = vadd.f32 %v216, 1e-05
    %v233 = vadd.f32 %v217, 1e-05
    %v234 = vadd.f32 %v218, 1e-05
    %v235 = vadd.f32 %v219, 1e-05
    %v236 = vadd.f32 %v220, 1e-05
    %v237 = vadd.f32 %v221, 1e-05
    %v238 = vrsqrt.pop %v222
    %v239 = vmul.f32 %v238, %v222
    %v240 = vmul.f32 %v239, %v238
    %v241 = vmul.f32 0.5, %v240
    %v242 = vsub.f32 1.5, %v241
    %v243 = vmul.f32 %v238, %v242
    %vm244 = vweird.f32 %v222
    %vm245 = vweird.f32 %v238
    %vm246 = vmor %vm244, %vm245
    %v247 = vsel %vm246, %v238, %v243
    %v248 = vrsqrt.pop %v223
    %v249 = vmul.f32 %v248, %v223
    %v250 = vmul.f32 %v249, %v248
    %v251 = vmul.f32 0.5, %v250
    %v252 = vsub.f32 1.5, %v251
    %v253 = vmul.f32 %v248, %v252
    %vm254 = vweird.f32 %v223
    %vm255 = vweird.f32 %v248
    %vm256 = vmor %vm254, %vm255
    %v257 = vsel %vm256, %v248, %v253
    %v258 = vrsqrt.pop %v224
    %v259 = vmul.f32 %v258, %v224
    %v260 = vmul.f32 %v259, %v258
    %v261 = vmul.f32 0.5, %v260
    %v262 = vsub.f32 1.5, %v261
    %v263 = vmul.f32 %v258, %v262
    %vm264 = vweird.f32 %v224
    %vm265 = vweird.f32 %v258
    %vm266 = vmor %vm264, %vm265
    %v267 = vsel %vm266, %v258, %v263
    %v268 = vrsqrt.pop %v225
    %v269 = vmul.f32 %v268, %v225
    %v270 = vmul.f32 %v269, %v268
    %v271 = vmul.f32 0.5, %v270
    %v272 = vsub.f32 1.5, %v271
    %v273 = vmul.f32 %v268, %v272
    %vm274 = vweird.f32 %v225
    %vm275 = vweird.f32 %v268
    %vm276 = vmor %vm274, %vm275
    %v277 = vsel %vm276, %v268, %v273
    %v278 = vrsqrt.pop %v226
    %v279 = vmul.f32 %v278, %v226
    %v280 = vmul.f32 %v279, %v278
    %v281 = vmul.f32 0.5, %v280
    %v282 = vsub.f32 1.5, %v281
    %v283 = vmul.f32 %v278, %v282
    %vm284 = vweird.f32 %v226
    %vm285 = vweird.f32 %v278
    %vm286 = vmor %vm284, %vm285
    %v287 = vsel %vm286, %v278, %v283
    %v288 = vrsqrt.pop %v227
    %v289 = vmul.f32 %v288, %v227
    %v290 = vmul.f32 %v289, %v288
    %v291 = vmul.f32 0.5, %v290
    %v292 = vsub.f32 1.5, %v291
    %v293 = vmul.f32 %v288, %v292
    %vm294 = vweird.f32 %v227
    %vm295 = vweird.f32 %v288
    %vm296 = vmor %vm294, %vm295
    %v297 = vsel %vm296, %v288, %v293
    %v298 = vrsqrt.pop %v228
    %v299 = vmul.f32 %v298, %v228
    %v300 = vmul.f32 %v299, %v298
    %v301 = vmul.f32 0.5, %v300
    %v302 = vsub.f32 1.5, %v301
    %v303 = vmul.f32 %v298, %v302
    %vm304 = vweird.f32 %v228
    %vm305 = vweird.f32 %v298
    %vm306 = vmor %vm304, %vm305
    %v307 = vsel %vm306, %v298, %v303
    %v308 = vrsqrt.pop %v229
    %v309 = vmul.f32 %v308, %v229
    %v310 = vmul.f32 %v309, %v308
    %v311 = vmul.f32 0.5, %v310
    %v312 = vsub.f32 1.5, %v311
    %v313 = vmul.f32 %v308, %v312
    %vm314 = vweird.f32 %v229
    %vm315 = vweird.f32 %v308
    %vm316 = vmor %vm314, %vm315
    %v317 = vsel %vm316, %v308, %v313
    %v318 = vrsqrt.pop %v230
    %v319 = vmul.f32 %v318, %v230
    %v320 = vmul.f32 %v319, %v318
    %v321 = vmul.f32 0.5, %v320
    %v322 = vsub.f32 1.5, %v321
    %v323 = vmul.f32 %v318, %v322
    %vm324 = vweird.f32 %v230
    %vm325 = vweird.f32 %v318
    %vm326 = vmor %vm324, %vm325
    %v327 = vsel %vm326, %v318, %v323
    %v328 = vrsqrt.pop %v231
    %v329 = vmul.f32 %v328, %v231
    %v330 = vmul.f32 %v329, %v328
    %v331 = vmul.f32 0.5, %v330
    %v332 = vsub.f32 1.5, %v331
    %v333 = vmul.f32 %v328, %v332
    %vm334 = vweird.f32 %v231
    %vm335 = vweird.f32 %v328
    %vm336 = vmor %vm334, %vm335
    %v337 = vsel %vm336, %v328, %v333
    %v338 = vrsqrt.pop %v232
    %v339 = vmul.f32 %v338, %v232
    %v340 = vmul.f32 %v339, %v338
    %v341 = vmul.f32 0.5, %v340
    %v342 = vsub.f32 1.5, %v341
    %v343 = vmul.f32 %v338, %v342
    %vm344 = vweird.f32 %v232
    %vm345 = vweird.f32 %v338
    %vm346 = vmor %vm344, %vm345
    %v347 = vsel %vm346, %v338, %v343
    %v348 = vrsqrt.pop %v233
    %v349 = vmul.f32 %v348, %v233
    %v350 = vmul.f32 %v349, %v348
    %v351 = vmul.f32 0.5, %v350
    %v352 = vsub.f32 1.5, %v351
    %v353 = vmul.f32 %v348, %v352
    %vm354 = vweird.f32 %v233
    %vm355 = vweird.f32 %v348
    %vm356 = vmor %vm354, %vm355
    %v357 = vsel %vm356, %v348, %v353
    %v358 = vrsqrt.pop %v234
    %v359 = vmul.f32 %v358, %v234
    %v360 = vmul.f32 %v359, %v358
    %v361 = vmul.f32 0.5, %v360
    %v362 = vsub.f32 1.5, %v361
    %v363 = vmul.f32 %v358, %v362
    %vm364 = vweird.f32 %v234
    %vm365 = vweird.f32 %v358
    %vm366 = vmor %vm364, %vm365
    %v367 = vsel %vm366, %v358, %v363
    %v368 = vrsqrt.pop %v235
    %v369 = vmul.f32 %v368, %v235
    %v370 = vmul.f32 %v369, %v368
    %v371 = vmul.f32 0.5, %v370
    %v372 = vsub.f32 1.5, %v371
    %v373 = vmul.f32 %v368, %v372
    %vm374 = vweird.f32 %v235
    %vm375 = vweird.f32 %v368
    %vm376 = vmor %vm374, %vm375
    %v377 = vsel %vm376, %v368, %v373
    %v378 = vrsqrt.pop %v236
    %v379 = vmul.f32 %v378, %v236
    %v380 = vmul.f32 %v379, %v378
    %v381 = vmul.f32 0.5, %v380
    %v382 = vsub.f32 1.5, %v381
    %v383 = vmul.f32 %v378, %v382
    %vm384 = vweird.f32 %v236
    %vm385 = vweird.f32 %v378
    %vm386 = vmor %vm384, %vm385
    %v387 = vsel %vm386, %v378, %v383
    %v388 = vrsqrt.pop %v237
    %v389 = vmul.f32 %v388, %v237
    %v390 = vmul.f32 %v389, %v388
    %v391 = vmul.f32 0.5, %v390
    %v392 = vsub.f32 1.5, %v391
    %v393 = vmul.f32 %v388, %v392
    %vm394 = vweird.f32 %v237
    %vm395 = vweird.f32 %v388
    %vm396 = vmor %vm394, %vm395
    %v397 = vsel %vm396, %v388, %v393
    %v398 = vmul.f32 %v126, %v247
    %v399 = vmul.f32 %v127, %v257
    %v400 = vmul.f32 %v128, %v267
    %v401 = vmul.f32 %v129, %v277
    %v402 = vmul.f32 %v130, %v287
    %v403 = vmul.f32 %v131, %v297
    %v404 = vmul.f32 %v132, %v307
    %v405 = vmul.f32 %v133, %v317
    %v406 = vmul.f32 %v134, %v327
    %v407 = vmul.f32 %v135, %v337
    %v408 = vmul.f32 %v136, %v347
    %v409 = vmul.f32 %v137, %v357
    %v410 = vmul.f32 %v138, %v367
    %v411 = vmul.f32 %v139, %v377
    %v412 = vmul.f32 %v140, %v387
    %v413 = vmul.f32 %v141, %v397
    %v415 = vperm.slane %v52, 0
    %v417 = vmul.f32 %v398, %v415
    %v418 = vmul.f32 %v399, %v415
    %v419 = vmul.f32 %v400, %v415
    %v420 = vmul.f32 %v401, %v415
    %v421 = vmul.f32 %v402, %v415
    %v422 = vmul.f32 %v403, %v415
    %v423 = vmul.f32 %v404, %v415
    %v424 = vmul.f32 %v405, %v415
    %v425 = vmul.f32 %v406, %v415
    %v426 = vmul.f32 %v407, %v415
    %v427 = vmul.f32 %v408, %v415
    %v428 = vmul.f32 %v409, %v415
    %v429 = vmul.f32 %v410, %v415
    %v430 = vmul.f32 %v411, %v415
    %v431 = vmul.f32 %v412, %v415
    %v432 = vmul.f32 %v413, %v415
    %v434 = vperm.slane %v53, 0
    %v436 = vadd.f32 %v417, %v434
    %v437 = vadd.f32 %v418, %v434
    %v438 = vadd.f32 %v419, %v434
    %v439 = vadd.f32 %v420, %v434
    %v440 = vadd.f32 %v421, %v434
    %v441 = vadd.f32 %v422, %v434
    %v442 = vadd.f32 %v423, %v434
    %v443 = vadd.f32 %v424, %v434
    %v444 = vadd.f32 %v425, %v434
    %v445 = vadd.f32 %v426, %v434
    %v446 = vadd.f32 %v427, %v434
    %v447 = vadd.f32 %v428, %v434
    %v448 = vadd.f32 %v429, %v434
    %v449 = vadd.f32 %v430, %v434
    %v450 = vadd.f32 %v431, %v434
    %v451 = vadd.f32 %v432, %v434
    %v452 = vld [vmem:[%s5] sm:$0xff]
    %v453 = vld [vmem:[%s5 + $0x8] sm:$0xff]
    %v454 = vld [vmem:[%s5 + $0x10] sm:$0xff]
    %v455 = vld [vmem:[%s5 + $0x18] sm:$0xff]
    %v456 = vld [vmem:[%s5 + $0x20] sm:$0xff]
    %v457 = vld [vmem:[%s5 + $0x28] sm:$0xff]
    %v458 = vld [vmem:[%s5 + $0x30] sm:$0xff]
    %v459 = vld [vmem:[%s5 + $0x38] sm:$0xff]
    %v460 = vld [vmem:[%s5 + $0x40] sm:$0xff]
    %v461 = vld [vmem:[%s5 + $0x48] sm:$0xff]
    %v462 = vld [vmem:[%s5 + $0x50] sm:$0xff]
    %v463 = vld [vmem:[%s5 + $0x58] sm:$0xff]
    %v464 = vld [vmem:[%s5 + $0x60] sm:$0xff]
    %v465 = vld [vmem:[%s5 + $0x68] sm:$0xff]
    %v466 = vld [vmem:[%s5 + $0x70] sm:$0xff]
    %v467 = vld [vmem:[%s5 + $0x78] sm:$0xff]
    %v468 = vld [vmem:[%s6] sm:$0x1]
    %v470 = vperm.slane %v468, 0
    %v473 = vsel %vm54, %v436, 0
    %v476 = vsel %vm54, %v437, 0
    %v479 = vsel %vm54, %v438, 0
    %v482 = vsel %vm54, %v439, 0
    %v485 = vsel %vm54, %v440, 0
    %v488 = vsel %vm54, %v441, 0
    %v491 = vsel %vm54, %v442, 0
    %v494 = vsel %vm54, %v443, 0
    %v497 = vsel %vm54, %v444, 0
    %v500 = vsel %vm54, %v445, 0
    %v503 = vsel %vm54, %v446, 0
    %v506 = vsel %vm54, %v447, 0
    %v509 = vsel %vm54, %v448, 0
    %v512 = vsel %vm54, %v449, 0
    %v515 = vsel %vm54, %v450, 0
    %v518 = vsel %vm54, %v451, 0
    %v521 = vsel %vm54, %v452, 0
    %v524 = vsel %vm54, %v453, 0
    %v527 = vsel %vm54, %v454, 0
    %v530 = vsel %vm54, %v455, 0
    %v533 = vsel %vm54, %v456, 0
    %v536 = vsel %vm54, %v457, 0
    %v539 = vsel %vm54, %v458, 0
    %v542 = vsel %vm54, %v459, 0
    %v545 = vsel %vm54, %v460, 0
    %v548 = vsel %vm54, %v461, 0
    %v551 = vsel %vm54, %v462, 0
    %v554 = vsel %vm54, %v463, 0
    %v557 = vsel %vm54, %v464, 0
    %v560 = vsel %vm54, %v465, 0
    %v563 = vsel %vm54, %v466, 0
    %v566 = vsel %vm54, %v467, 0
    %568 = vmatpush.xpose.msra.mxu0 %v566
    %569 = vmatpush.xpose.msra.mxu0 %v563
    %570 = vmatpush.xpose.msra.mxu0 %v560
    %571 = vmatpush.xpose.msra.mxu0 %v557
    %572 = vmatpush.xpose.msra.mxu0 %v554
    %573 = vmatpush.xpose.msra.mxu0 %v551
    %574 = vmatpush.xpose.msra.mxu0 %v548
    %575 = vmatpush.xpose.msra.mxu0 %v545
    %576 = vmatpush.xpose.msra.mxu0 %v542
    %577 = vmatpush.xpose.msra.mxu0 %v539
    %578 = vmatpush.xpose.msra.mxu0 %v536
    %579 = vmatpush.xpose.msra.mxu0 %v533
    %580 = vmatpush.xpose.msra.mxu0 %v530
    %581 = vmatpush.xpose.msra.mxu0 %v527
    %582 = vmatpush.xpose.msra.mxu0 %v524
    %583 = vmatpush.xpose.msra.mxu0 %v521
    %584 = vmatmul.f32.gmra.mxu0 %v473
    %v585 = vpop.f32.mrf.mxu0
    %v586 = vadd.f32 %v470, %v585
    %587 = vmatmul.f32.gmra.mxu0 %v476
    %v588 = vpop.f32.mrf.mxu0
    %v589 = vadd.f32 %v470, %v588
    %590 = vmatmul.f32.gmra.mxu0 %v479
    %v591 = vpop.f32.mrf.mxu0
    %v592 = vadd.f32 %v470, %v591
    %593 = vmatmul.f32.gmra.mxu0 %v482
    %v594 = vpop.f32.mrf.mxu0
    %v595 = vadd.f32 %v470, %v594
    %596 = vmatmul.f32.gmra.mxu0 %v485
    %v597 = vpop.f32.mrf.mxu0
    %v598 = vadd.f32 %v470, %v597
    %599 = vmatmul.f32.gmra.mxu0 %v488
    %v600 = vpop.f32.mrf.mxu0
    %v601 = vadd.f32 %v470, %v600
    %602 = vmatmul.f32.gmra.mxu0 %v491
    %v603 = vpop.f32.mrf.mxu0
    %v604 = vadd.f32 %v470, %v603
    %605 = vmatmul.f32.gmra.mxu0 %v494
    %v606 = vpop.f32.mrf.mxu0
    %v607 = vadd.f32 %v470, %v606
    %608 = vmatmul.f32.gmra.mxu0 %v497
    %v609 = vpop.f32.mrf.mxu0
    %v610 = vadd.f32 %v470, %v609
    %611 = vmatmul.f32.gmra.mxu0 %v500
    %v612 = vpop.f32.mrf.mxu0
    %v613 = vadd.f32 %v470, %v612
    %614 = vmatmul.f32.gmra.mxu0 %v503
    %v615 = vpop.f32.mrf.mxu0
    %v616 = vadd.f32 %v470, %v615
    %617 = vmatmul.f32.gmra.mxu0 %v506
    %v618 = vpop.f32.mrf.mxu0
    %v619 = vadd.f32 %v470, %v618
    %620 = vmatmul.f32.gmra.mxu0 %v509
    %v621 = vpop.f32.mrf.mxu0
    %v622 = vadd.f32 %v470, %v621
    %623 = vmatmul.f32.gmra.mxu0 %v512
    %v624 = vpop.f32.mrf.mxu0
    %v625 = vadd.f32 %v470, %v624
    %626 = vmatmul.f32.gmra.mxu0 %v515
    %v627 = vpop.f32.mrf.mxu0
    %v628 = vadd.f32 %v470, %v627
    %629 = vmatmul.f32.gmra.mxu0 %v518
    %v630 = vpop.f32.mrf.mxu0
    %v631 = vadd.f32 %v470, %v630
    %632 = vdwg.mxu0
    %v633 = vld [vmem:[%s3] sm:$0xff]
    %v634 = vld [vmem:[%s3 + $0x8] sm:$0xff]
    %v635 = vld [vmem:[%s3 + $0x10] sm:$0xff]
    %v636 = vld [vmem:[%s3 + $0x18] sm:$0xff]
    %v637 = vld [vmem:[%s3 + $0x20] sm:$0xff]
    %v638 = vld [vmem:[%s3 + $0x28] sm:$0xff]
    %v639 = vld [vmem:[%s3 + $0x30] sm:$0xff]
    %v640 = vld [vmem:[%s3 + $0x38] sm:$0xff]
    %v641 = vld [vmem:[%s4] sm:$0x1]
    %v643 = vperm.slane %v641, 0
    %v646 = vsel %vm54, %v633, 0
    %v649 = vsel %vm54, %v634, 0
    %v652 = vsel %vm54, %v635, 0
    %v655 = vsel %vm54, %v636, 0
    %v658 = vsel %vm54, %v637, 0
    %v661 = vsel %vm54, %v638, 0
    %v664 = vsel %vm54, %v639, 0
    %v667 = vsel %vm54, %v640, 0
    %669 = vmatpush.xpose.msra.mxu0 0.0
    %670 = vmatpush.xpose.msra.mxu0 0.0
    %671 = vmatpush.xpose.msra.mxu0 0.0
    %672 = vmatpush.xpose.msra.mxu0 0.0
    %673 = vmatpush.xpose.msra.mxu0 0.0
    %674 = vmatpush.xpose.msra.mxu0 0.0
    %675 = vmatpush.xpose.msra.mxu0 0.0
    %676 = vmatpush.xpose.msra.mxu0 0.0
    %677 = vmatpush.xpose.msra.mxu0 %v667
    %678 = vmatpush.xpose.msra.mxu0 %v664
    %679 = vmatpush.xpose.msra.mxu0 %v661
    %680 = vmatpush.xpose.msra.mxu0 %v658
    %681 = vmatpush.xpose.msra.mxu0 %v655
    %682 = vmatpush.xpose.msra.mxu0 %v652
    %683 = vmatpush.xpose.msra.mxu0 %v649
    %684 = vmatpush.xpose.msra.mxu0 %v646
    %685 = vmatmul.f32.gmra.mxu0 %v473
    %v686 = vpop.f32.mrf.mxu0
    %v687 = vadd.f32 %v643, %v686
    %688 = vmatmul.f32.gmra.mxu0 %v476
    %v689 = vpop.f32.mrf.mxu0
    %v690 = vadd.f32 %v643, %v689
    %691 = vmatmul.f32.gmra.mxu0 %v479
    %v692 = vpop.f32.mrf.mxu0
    %v693 = vadd.f32 %v643, %v692
    %694 = vmatmul.f32.gmra.mxu0 %v482
    %v695 = vpop.f32.mrf.mxu0
    %v696 = vadd.f32 %v643, %v695
    %697 = vmatmul.f32.gmra.mxu0 %v485
    %v698 = vpop.f32.mrf.mxu0
    %v699 = vadd.f32 %v643, %v698
    %700 = vmatmul.f32.gmra.mxu0 %v488
    %v701 = vpop.f32.mrf.mxu0
    %v702 = vadd.f32 %v643, %v701
    %703 = vmatmul.f32.gmra.mxu0 %v491
    %v704 = vpop.f32.mrf.mxu0
    %v705 = vadd.f32 %v643, %v704
    %706 = vmatmul.f32.gmra.mxu0 %v494
    %v707 = vpop.f32.mrf.mxu0
    %v708 = vadd.f32 %v643, %v707
    %709 = vmatmul.f32.gmra.mxu0 %v497
    %v710 = vpop.f32.mrf.mxu0
    %v711 = vadd.f32 %v643, %v710
    %712 = vmatmul.f32.gmra.mxu0 %v500
    %v713 = vpop.f32.mrf.mxu0
    %v714 = vadd.f32 %v643, %v713
    %715 = vmatmul.f32.gmra.mxu0 %v503
    %v716 = vpop.f32.mrf.mxu0
    %v717 = vadd.f32 %v643, %v716
    %718 = vmatmul.f32.gmra.mxu0 %v506
    %v719 = vpop.f32.mrf.mxu0
    %v720 = vadd.f32 %v643, %v719
    %721 = vmatmul.f32.gmra.mxu0 %v509
    %v722 = vpop.f32.mrf.mxu0
    %v723 = vadd.f32 %v643, %v722
    %724 = vmatmul.f32.gmra.mxu0 %v512
    %v725 = vpop.f32.mrf.mxu0
    %v726 = vadd.f32 %v643, %v725
    %727 = vmatmul.f32.gmra.mxu0 %v515
    %v728 = vpop.f32.mrf.mxu0
    %v729 = vadd.f32 %v643, %v728
    %730 = vmatmul.f32.gmra.mxu0 %v518
    %v731 = vpop.f32.mrf.mxu0
    %v732 = vadd.f32 %v643, %v731
    %733 = vdwg.mxu0
    %734 = vxpose.xlu0.b32.start [1/16] %v687, 128
    %735 = vxpose.xlu0.b32.cont [2/16] %v690, 128
    %736 = vxpose.xlu0.b32.cont [3/16] 0.0, 128
    %737 = vxpose.xlu0.b32.cont [4/16] 0.0, 128
    %738 = vxpose.xlu0.b32.cont [5/16] 0.0, 128
    %739 = vxpose.xlu0.b32.cont [6/16] 0.0, 128
    %740 = vxpose.xlu0.b32.cont [7/16] 0.0, 128
    %741 = vxpose.xlu0.b32.cont [8/16] 0.0, 128
    %742 = vxpose.xlu0.b32.cont [9/16] 0.0, 128
    %743 = vxpose.xlu0.b32.cont [10/16] 0.0, 128
    %744 = vxpose.xlu0.b32.cont [11/16] 0.0, 128
    %745 = vxpose.xlu0.b32.cont [12/16] 0.0, 128
    %746 = vxpose.xlu0.b32.cont [13/16] 0.0, 128
    %747 = vxpose.xlu0.b32.cont [14/16] 0.0, 128
    %748 = vxpose.xlu0.b32.cont [15/16] 0.0, 128
    %749 = vxpose.xlu0.b32.end [16/16] 0.0, 128
    %v750 = vpop.trf.xlu0
    %v751 = vpop.trf.xlu0
    %v752 = vpop.trf.xlu0
    %v753 = vpop.trf.xlu0
    %v754 = vpop.trf.xlu0
    %v755 = vpop.trf.xlu0
    %v756 = vpop.trf.xlu0
    %v757 = vpop.trf.xlu0
    %v758 = vpop.trf.xlu0
    %v759 = vpop.trf.xlu0
    %v760 = vpop.trf.xlu0
    %v761 = vpop.trf.xlu0
    %v762 = vpop.trf.xlu0
    %v763 = vpop.trf.xlu0
    %v764 = vpop.trf.xlu0
    %v765 = vpop.trf.xlu0
    %766 = vxpose.xlu0.b32.start [1/16] %v693, 128
    %767 = vxpose.xlu0.b32.cont [2/16] %v696, 128
    %768 = vxpose.xlu0.b32.cont [3/16] 0.0, 128
    %769 = vxpose.xlu0.b32.cont [4/16] 0.0, 128
    %770 = vxpose.xlu0.b32.cont [5/16] 0.0, 128
    %771 = vxpose.xlu0.b32.cont [6/16] 0.0, 128
    %772 = vxpose.xlu0.b32.cont [7/16] 0.0, 128
    %773 = vxpose.xlu0.b32.cont [8/16] 0.0, 128
    %774 = vxpose.xlu0.b32.cont [9/16] 0.0, 128
    %775 = vxpose.xlu0.b32.cont [10/16] 0.0, 128
    %776 = vxpose.xlu0.b32.cont [11/16] 0.0, 128
    %777 = vxpose.xlu0.b32.cont [12/16] 0.0, 128
    %778 = vxpose.xlu0.b32.cont [13/16] 0.0, 128
    %779 = vxpose.xlu0.b32.cont [14/16] 0.0, 128
    %780 = vxpose.xlu0.b32.cont [15/16] 0.0, 128
    %781 = vxpose.xlu0.b32.end [16/16] 0.0, 128
    %v782 = vpop.trf.xlu0
    %v783 = vpop.trf.xlu0
    %v784 = vpop.trf.xlu0
    %v785 = vpop.trf.xlu0
    %v786 = vpop.trf.xlu0
    %v787 = vpop.trf.xlu0
    %v788 = vpop.trf.xlu0
    %v789 = vpop.trf.xlu0
    %v790 = vpop.trf.xlu0
    %v791 = vpop.trf.xlu0
    %v792 = vpop.trf.xlu0
    %v793 = vpop.trf.xlu0
    %v794 = vpop.trf.xlu0
    %v795 = vpop.trf.xlu0
    %v796 = vpop.trf.xlu0
    %v797 = vpop.trf.xlu0
    %798 = vxpose.xlu0.b32.start [1/16] %v699, 128
    %799 = vxpose.xlu0.b32.cont [2/16] %v702, 128
    %800 = vxpose.xlu0.b32.cont [3/16] 0.0, 128
    %801 = vxpose.xlu0.b32.cont [4/16] 0.0, 128
    %802 = vxpose.xlu0.b32.cont [5/16] 0.0, 128
    %803 = vxpose.xlu0.b32.cont [6/16] 0.0, 128
    %804 = vxpose.xlu0.b32.cont [7/16] 0.0, 128
    %805 = vxpose.xlu0.b32.cont [8/16] 0.0, 128
    %806 = vxpose.xlu0.b32.cont [9/16] 0.0, 128
    %807 = vxpose.xlu0.b32.cont [10/16] 0.0, 128
    %808 = vxpose.xlu0.b32.cont [11/16] 0.0, 128
    %809 = vxpose.xlu0.b32.cont [12/16] 0.0, 128
    %810 = vxpose.xlu0.b32.cont [13/16] 0.0, 128
    %811 = vxpose.xlu0.b32.cont [14/16] 0.0, 128
    %812 = vxpose.xlu0.b32.cont [15/16] 0.0, 128
    %813 = vxpose.xlu0.b32.end [16/16] 0.0, 128
    %v814 = vpop.trf.xlu0
    %v815 = vpop.trf.xlu0
    %v816 = vpop.trf.xlu0
    %v817 = vpop.trf.xlu0
    %v818 = vpop.trf.xlu0
    %v819 = vpop.trf.xlu0
    %v820 = vpop.trf.xlu0
    %v821 = vpop.trf.xlu0
    %v822 = vpop.trf.xlu0
    %v823 = vpop.trf.xlu0
    %v824 = vpop.trf.xlu0
    %v825 = vpop.trf.xlu0
    %v826 = vpop.trf.xlu0
    %v827 = vpop.trf.xlu0
    %v828 = vpop.trf.xlu0
    %v829 = vpop.trf.xlu0
    %830 = vxpose.xlu0.b32.start [1/16] %v705, 128
    %831 = vxpose.xlu0.b32.cont [2/16] %v708, 128
    %832 = vxpose.xlu0.b32.cont [3/16] 0.0, 128
    %833 = vxpose.xlu0.b32.cont [4/16] 0.0, 128
    %834 = vxpose.xlu0.b32.cont [5/16] 0.0, 128
    %835 = vxpose.xlu0.b32.cont [6/16] 0.0, 128
    %836 = vxpose.xlu0.b32.cont [7/16] 0.0, 128
    %837 = vxpose.xlu0.b32.cont [8/16] 0.0, 128
    %838 = vxpose.xlu0.b32.cont [9/16] 0.0, 128
    %839 = vxpose.xlu0.b32.cont [10/16] 0.0, 128
    %840 = vxpose.xlu0.b32.cont [11/16] 0.0, 128
    %841 = vxpose.xlu0.b32.cont [12/16] 0.0, 128
    %842 = vxpose.xlu0.b32.cont [13/16] 0.0, 128
    %843 = vxpose.xlu0.b32.cont [14/16] 0.0, 128
    %844 = vxpose.xlu0.b32.cont [15/16] 0.0, 128
    %845 = vxpose.xlu0.b32.end [16/16] 0.0, 128
    %v846 = vpop.trf.xlu0
    %v847 = vpop.trf.xlu0
    %v848 = vpop.trf.xlu0
    %v849 = vpop.trf.xlu0
    %v850 = vpop.trf.xlu0
    %v851 = vpop.trf.xlu0
    %v852 = vpop.trf.xlu0
    %v853 = vpop.trf.xlu0
    %v854 = vpop.trf.xlu0
    %v855 = vpop.trf.xlu0
    %v856 = vpop.trf.xlu0
    %v857 = vpop.trf.xlu0
    %v858 = vpop.trf.xlu0
    %v859 = vpop.trf.xlu0
    %v860 = vpop.trf.xlu0
    %v861 = vpop.trf.xlu0
    %862 = vxpose.xlu0.b32.start [1/16] %v711, 128
    %863 = vxpose.xlu0.b32.cont [2/16] %v714, 128
    %864 = vxpose.xlu0.b32.cont [3/16] 0.0, 128
    %865 = vxpose.xlu0.b32.cont [4/16] 0.0, 128
    %866 = vxpose.xlu0.b32.cont [5/16] 0.0, 128
    %867 = vxpose.xlu0.b32.cont [6/16] 0.0, 128
    %868 = vxpose.xlu0.b32.cont [7/16] 0.0, 128
    %869 = vxpose.xlu0.b32.cont [8/16] 0.0, 128
    %870 = vxpose.xlu0.b32.cont [9/16] 0.0, 128
    %871 = vxpose.xlu0.b32.cont [10/16] 0.0, 128
    %872 = vxpose.xlu0.b32.cont [11/16] 0.0, 128
    %873 = vxpose.xlu0.b32.cont [12/16] 0.0, 128
    %874 = vxpose.xlu0.b32.cont [13/16] 0.0, 128
    %875 = vxpose.xlu0.b32.cont [14/16] 0.0, 128
    %876 = vxpose.xlu0.b32.cont [15/16] 0.0, 128
    %877 = vxpose.xlu0.b32.end [16/16] 0.0, 128
    %v878 = vpop.trf.xlu0
    %v879 = vpop.trf.xlu0
    %v880 = vpop.trf.xlu0
    %v881 = vpop.trf.xlu0
    %v882 = vpop.trf.xlu0
    %v883 = vpop.trf.xlu0
    %v884 = vpop.trf.xlu0
    %v885 = vpop.trf.xlu0
    %v886 = vpop.trf.xlu0
    %v887 = vpop.trf.xlu0
    %v888 = vpop.trf.xlu0
    %v889 = vpop.trf.xlu0
    %v890 = vpop.trf.xlu0
    %v891 = vpop.trf.xlu0
    %v892 = vpop.trf.xlu0
    %v893 = vpop.trf.xlu0
    %894 = vxpose.xlu0.b32.start [1/16] %v717, 128
    %895 = vxpose.xlu0.b32.cont [2/16] %v720, 128
    %896 = vxpose.xlu0.b32.cont [3/16] 0.0, 128
    %897 = vxpose.xlu0.b32.cont [4/16] 0.0, 128
    %898 = vxpose.xlu0.b32.cont [5/16] 0.0, 128
    %899 = vxpose.xlu0.b32.cont [6/16] 0.0, 128
    %900 = vxpose.xlu0.b32.cont [7/16] 0.0, 128
    %901 = vxpose.xlu0.b32.cont [8/16] 0.0, 128
    %902 = vxpose.xlu0.b32.cont [9/16] 0.0, 128
    %903 = vxpose.xlu0.b32.cont [10/16] 0.0, 128
    %904 = vxpose.xlu0.b32.cont [11/16] 0.0, 128
    %905 = vxpose.xlu0.b32.cont [12/16] 0.0, 128
    %906 = vxpose.xlu0.b32.cont [13/16] 0.0, 128
    %907 = vxpose.xlu0.b32.cont [14/16] 0.0, 128
    %908 = vxpose.xlu0.b32.cont [15/16] 0.0, 128
    %909 = vxpose.xlu0.b32.end [16/16] 0.0, 128
    %v910 = vpop.trf.xlu0
    %v911 = vpop.trf.xlu0
    %v912 = vpop.trf.xlu0
    %v913 = vpop.trf.xlu0
    %v914 = vpop.trf.xlu0
    %v915 = vpop.trf.xlu0
    %v916 = vpop.trf.xlu0
    %v917 = vpop.trf.xlu0
    %v918 = vpop.trf.xlu0
    %v919 = vpop.trf.xlu0
    %v920 = vpop.trf.xlu0
    %v921 = vpop.trf.xlu0
    %v922 = vpop.trf.xlu0
    %v923 = vpop.trf.xlu0
    %v924 = vpop.trf.xlu0
    %v925 = vpop.trf.xlu0
    %926 = vxpose.xlu0.b32.start [1/16] %v723, 128
    %927 = vxpose.xlu0.b32.cont [2/16] %v726, 128
    %928 = vxpose.xlu0.b32.cont [3/16] 0.0, 128
    %929 = vxpose.xlu0.b32.cont [4/16] 0.0, 128
    %930 = vxpose.xlu0.b32.cont [5/16] 0.0, 128
    %931 = vxpose.xlu0.b32.cont [6/16] 0.0, 128
    %932 = vxpose.xlu0.b32.cont [7/16] 0.0, 128
    %933 = vxpose.xlu0.b32.cont [8/16] 0.0, 128
    %934 = vxpose.xlu0.b32.cont [9/16] 0.0, 128
    %935 = vxpose.xlu0.b32.cont [10/16] 0.0, 128
    %936 = vxpose.xlu0.b32.cont [11/16] 0.0, 128
    %937 = vxpose.xlu0.b32.cont [12/16] 0.0, 128
    %938 = vxpose.xlu0.b32.cont [13/16] 0.0, 128
    %939 = vxpose.xlu0.b32.cont [14/16] 0.0, 128
    %940 = vxpose.xlu0.b32.cont [15/16] 0.0, 128
    %941 = vxpose.xlu0.b32.end [16/16] 0.0, 128
    %v942 = vpop.trf.xlu0
    %v943 = vpop.trf.xlu0
    %v944 = vpop.trf.xlu0
    %v945 = vpop.trf.xlu0
    %v946 = vpop.trf.xlu0
    %v947 = vpop.trf.xlu0
    %v948 = vpop.trf.xlu0
    %v949 = vpop.trf.xlu0
    %v950 = vpop.trf.xlu0
    %v951 = vpop.trf.xlu0
    %v952 = vpop.trf.xlu0
    %v953 = vpop.trf.xlu0
    %v954 = vpop.trf.xlu0
    %v955 = vpop.trf.xlu0
    %v956 = vpop.trf.xlu0
    %v957 = vpop.trf.xlu0
    %958 = vxpose.xlu0.b32.start [1/16] %v729, 128
    %959 = vxpose.xlu0.b32.cont [2/16] %v732, 128
    %960 = vxpose.xlu0.b32.cont [3/16] 0.0, 128
    %961 = vxpose.xlu0.b32.cont [4/16] 0.0, 128
    %962 = vxpose.xlu0.b32.cont [5/16] 0.0, 128
    %963 = vxpose.xlu0.b32.cont [6/16] 0.0, 128
    %964 = vxpose.xlu0.b32.cont [7/16] 0.0, 128
    %965 = vxpose.xlu0.b32.cont [8/16] 0.0, 128
    %966 = vxpose.xlu0.b32.cont [9/16] 0.0, 128
    %967 = vxpose.xlu0.b32.cont [10/16] 0.0, 128
    %968 = vxpose.xlu0.b32.cont [11/16] 0.0, 128
    %969 = vxpose.xlu0.b32.cont [12/16] 0.0, 128
    %970 = vxpose.xlu0.b32.cont [13/16] 0.0, 128
    %971 = vxpose.xlu0.b32.cont [14/16] 0.0, 128
    %972 = vxpose.xlu0.b32.cont [15/16] 0.0, 128
    %973 = vxpose.xlu0.b32.end [16/16] 0.0, 128
    %v974 = vpop.trf.xlu0
    %v975 = vpop.trf.xlu0
    %v976 = vpop.trf.xlu0
    %v977 = vpop.trf.xlu0
    %v978 = vpop.trf.xlu0
    %v979 = vpop.trf.xlu0
    %v980 = vpop.trf.xlu0
    %v981 = vpop.trf.xlu0
    %v982 = vpop.trf.xlu0
    %v983 = vpop.trf.xlu0
    %v984 = vpop.trf.xlu0
    %v985 = vpop.trf.xlu0
    %v986 = vpop.trf.xlu0
    %v987 = vpop.trf.xlu0
    %v988 = vpop.trf.xlu0
    %v989 = vpop.trf.xlu0
    %vm990 = vcmask 130048
    %v991 = vsel %vm990, %v750, -inf
    %992 = vmax.xlane.f32.xlu0 %v991
    %v993 = vpop.xlane.xlu0 %992
    %v994 = vsel %vm990, %v751, -inf
    %995 = vmax.xlane.f32.xlu0 %v994
    %v996 = vpop.xlane.xlu0 %995
    %v997 = vsel %vm990, %v752, -inf
    %998 = vmax.xlane.f32.xlu0 %v997
    %v999 = vpop.xlane.xlu0 %998
    %v1000 = vsel %vm990, %v753, -inf
    %1001 = vmax.xlane.f32.xlu0 %v1000
    %v1002 = vpop.xlane.xlu0 %1001
    %v1003 = vsel %vm990, %v754, -inf
    %1004 = vmax.xlane.f32.xlu0 %v1003
    %v1005 = vpop.xlane.xlu0 %1004
    %v1006 = vsel %vm990, %v755, -inf
    %1007 = vmax.xlane.f32.xlu0 %v1006
    %v1008 = vpop.xlane.xlu0 %1007
    %v1009 = vsel %vm990, %v756, -inf
    %1010 = vmax.xlane.f32.xlu0 %v1009
    %v1011 = vpop.xlane.xlu0 %1010
    %v1012 = vsel %vm990, %v757, -inf
    %1013 = vmax.xlane.f32.xlu0 %v1012
    %v1014 = vpop.xlane.xlu0 %1013
    %v1015 = vsel %vm990, %v782, -inf
    %1016 = vmax.xlane.f32.xlu0 %v1015
    %v1017 = vpop.xlane.xlu0 %1016
    %v1018 = vsel %vm990, %v783, -inf
    %1019 = vmax.xlane.f32.xlu0 %v1018
    %v1020 = vpop.xlane.xlu0 %1019
    %v1021 = vsel %vm990, %v784, -inf
    %1022 = vmax.xlane.f32.xlu0 %v1021
    %v1023 = vpop.xlane.xlu0 %1022
    %v1024 = vsel %vm990, %v785, -inf
    %1025 = vmax.xlane.f32.xlu0 %v1024
    %v1026 = vpop.xlane.xlu0 %1025
    %v1027 = vsel %vm990, %v786, -inf
    %1028 = vmax.xlane.f32.xlu0 %v1027
    %v1029 = vpop.xlane.xlu0 %1028
    %v1030 = vsel %vm990, %v787, -inf
    %1031 = vmax.xlane.f32.xlu0 %v1030
    %v1032 = vpop.xlane.xlu0 %1031
    %v1033 = vsel %vm990, %v788, -inf
    %1034 = vmax.xlane.f32.xlu0 %v1033
    %v1035 = vpop.xlane.xlu0 %1034
    %v1036 = vsel %vm990, %v789, -inf
    %1037 = vmax.xlane.f32.xlu0 %v1036
    %v1038 = vpop.xlane.xlu0 %1037
    %v1039 = vsel %vm990, %v814, -inf
    %1040 = vmax.xlane.f32.xlu0 %v1039
    %v1041 = vpop.xlane.xlu0 %1040
    %v1042 = vsel %vm990, %v815, -inf
    %1043 = vmax.xlane.f32.xlu0 %v1042
    %v1044 = vpop.xlane.xlu0 %1043
    %v1045 = vsel %vm990, %v816, -inf
    %1046 = vmax.xlane.f32.xlu0 %v1045
    %v1047 = vpop.xlane.xlu0 %1046
    %v1048 = vsel %vm990, %v817, -inf
    %1049 = vmax.xlane.f32.xlu0 %v1048
    %v1050 = vpop.xlane.xlu0 %1049
    %v1051 = vsel %vm990, %v818, -inf
    %1052 = vmax.xlane.f32.xlu0 %v1051
    %v1053 = vpop.xlane.xlu0 %1052
    %v1054 = vsel %vm990, %v819, -inf
    %1055 = vmax.xlane.f32.xlu0 %v1054
    %v1056 = vpop.xlane.xlu0 %1055
    %v1057 = vsel %vm990, %v820, -inf
    %1058 = vmax.xlane.f32.xlu0 %v1057
    %v1059 = vpop.xlane.xlu0 %1058
    %v1060 = vsel %vm990, %v821, -inf
    %1061 = vmax.xlane.f32.xlu0 %v1060
    %v1062 = vpop.xlane.xlu0 %1061
    %v1063 = vsel %vm990, %v846, -inf
    %1064 = vmax.xlane.f32.xlu0 %v1063
    %v1065 = vpop.xlane.xlu0 %1064
    %v1066 = vsel %vm990, %v847, -inf
    %1067 = vmax.xlane.f32.xlu0 %v1066
    %v1068 = vpop.xlane.xlu0 %1067
    %v1069 = vsel %vm990, %v848, -inf
    %1070 = vmax.xlane.f32.xlu0 %v1069
    %v1071 = vpop.xlane.xlu0 %1070
    %v1072 = vsel %vm990, %v849, -inf
    %1073 = vmax.xlane.f32.xlu0 %v1072
    %v1074 = vpop.xlane.xlu0 %1073
    %v1075 = vsel %vm990, %v850, -inf
    %1076 = vmax.xlane.f32.xlu0 %v1075
    %v1077 = vpop.xlane.xlu0 %1076
    %v1078 = vsel %vm990, %v851, -inf
    %1079 = vmax.xlane.f32.xlu0 %v1078
    %v1080 = vpop.xlane.xlu0 %1079
    %v1081 = vsel %vm990, %v852, -inf
    %1082 = vmax.xlane.f32.xlu0 %v1081
    %v1083 = vpop.xlane.xlu0 %1082
    %v1084 = vsel %vm990, %v853, -inf
    %1085 = vmax.xlane.f32.xlu0 %v1084
    %v1086 = vpop.xlane.xlu0 %1085
    %v1087 = vsel %vm990, %v878, -inf
    %1088 = vmax.xlane.f32.xlu0 %v1087
    %v1089 = vpop.xlane.xlu0 %1088
    %v1090 = vsel %vm990, %v879, -inf
    %1091 = vmax.xlane.f32.xlu0 %v1090
    %v1092 = vpop.xlane.xlu0 %1091
    %v1093 = vsel %vm990, %v880, -inf
    %1094 = vmax.xlane.f32.xlu0 %v1093
    %v1095 = vpop.xlane.xlu0 %1094
    %v1096 = vsel %vm990, %v881, -inf
    %1097 = vmax.xlane.f32.xlu0 %v1096
    %v1098 = vpop.xlane.xlu0 %1097
    %v1099 = vsel %vm990, %v882, -inf
    %1100 = vmax.xlane.f32.xlu0 %v1099
    %v1101 = vpop.xlane.xlu0 %1100
    %v1102 = vsel %vm990, %v883, -inf
    %1103 = vmax.xlane.f32.xlu0 %v1102
    %v1104 = vpop.xlane.xlu0 %1103
    %v1105 = vsel %vm990, %v884, -inf
    %1106 = vmax.xlane.f32.xlu0 %v1105
    %v1107 = vpop.xlane.xlu0 %1106
    %v1108 = vsel %vm990, %v885, -inf
    %1109 = vmax.xlane.f32.xlu0 %v1108
    %v1110 = vpop.xlane.xlu0 %1109
    %v1111 = vsel %vm990, %v910, -inf
    %1112 = vmax.xlane.f32.xlu0 %v1111
    %v1113 = vpop.xlane.xlu0 %1112
    %v1114 = vsel %vm990, %v911, -inf
    %1115 = vmax.xlane.f32.xlu0 %v1114
    %v1116 = vpop.xlane.xlu0 %1115
    %v1117 = vsel %vm990, %v912, -inf
    %1118 = vmax.xlane.f32.xlu0 %v1117
    %v1119 = vpop.xlane.xlu0 %1118
    %v1120 = vsel %vm990, %v913, -inf
    %1121 = vmax.xlane.f32.xlu0 %v1120
    %v1122 = vpop.xlane.xlu0 %1121
    %v1123 = vsel %vm990, %v914, -inf
    %1124 = vmax.xlane.f32.xlu0 %v1123
    %v1125 = vpop.xlane.xlu0 %1124
    %v1126 = vsel %vm990, %v915, -inf
    %1127 = vmax.xlane.f32.xlu0 %v1126
    %v1128 = vpop.xlane.xlu0 %1127
    %v1129 = vsel %vm990, %v916, -inf
    %1130 = vmax.xlane.f32.xlu0 %v1129
    %v1131 = vpop.xlane.xlu0 %1130
    %v1132 = vsel %vm990, %v917, -inf
    %1133 = vmax.xlane.f32.xlu0 %v1132
    %v1134 = vpop.xlane.xlu0 %1133
    %v1135 = vsel %vm990, %v942, -inf
    %1136 = vmax.xlane.f32.xlu0 %v1135
    %v1137 = vpop.xlane.xlu0 %1136
    %v1138 = vsel %vm990, %v943, -inf
    %1139 = vmax.xlane.f32.xlu0 %v1138
    %v1140 = vpop.xlane.xlu0 %1139
    %v1141 = vsel %vm990, %v944, -inf
    %1142 = vmax.xlane.f32.xlu0 %v1141
    %v1143 = vpop.xlane.xlu0 %1142
    %v1144 = vsel %vm990, %v945, -inf
    %1145 = vmax.xlane.f32.xlu0 %v1144
    %v1146 = vpop.xlane.xlu0 %1145
    %v1147 = vsel %vm990, %v946, -inf
    %1148 = vmax.xlane.f32.xlu0 %v1147
    %v1149 = vpop.xlane.xlu0 %1148
    %v1150 = vsel %vm990, %v947, -inf
    %1151 = vmax.xlane.f32.xlu0 %v1150
    %v1152 = vpop.xlane.xlu0 %1151
    %v1153 = vsel %vm990, %v948, -inf
    %1154 = vmax.xlane.f32.xlu0 %v1153
    %v1155 = vpop.xlane.xlu0 %1154
    %v1156 = vsel %vm990, %v949, -inf
    %1157 = vmax.xlane.f32.xlu0 %v1156
    %v1158 = vpop.xlane.xlu0 %1157
    %v1159 = vsel %vm990, %v974, -inf
    %1160 = vmax.xlane.f32.xlu0 %v1159
    %v1161 = vpop.xlane.xlu0 %1160
    %v1162 = vsel %vm990, %v975, -inf
    %1163 = vmax.xlane.f32.xlu0 %v1162
    %v1164 = vpop.xlane.xlu0 %1163
    %v1165 = vsel %vm990, %v976, -inf
    %1166 = vmax.xlane.f32.xlu0 %v1165
    %v1167 = vpop.xlane.xlu0 %1166
    %v1168 = vsel %vm990, %v977, -inf
    %1169 = vmax.xlane.f32.xlu0 %v1168
    %v1170 = vpop.xlane.xlu0 %1169
    %v1171 = vsel %vm990, %v978, -inf
    %1172 = vmax.xlane.f32.xlu0 %v1171
    %v1173 = vpop.xlane.xlu0 %1172
    %v1174 = vsel %vm990, %v979, -inf
    %1175 = vmax.xlane.f32.xlu0 %v1174
    %v1176 = vpop.xlane.xlu0 %1175
    %v1177 = vsel %vm990, %v980, -inf
    %1178 = vmax.xlane.f32.xlu0 %v1177
    %v1179 = vpop.xlane.xlu0 %1178
    %v1180 = vsel %vm990, %v981, -inf
    %1181 = vmax.xlane.f32.xlu0 %v1180
    %v1182 = vpop.xlane.xlu0 %1181
    %v1183 = vsub.f32 %v750, %v993
    %v1184 = vsub.f32 %v751, %v996
    %v1185 = vsub.f32 %v752, %v999
    %v1186 = vsub.f32 %v753, %v1002
    %v1187 = vsub.f32 %v754, %v1005
    %v1188 = vsub.f32 %v755, %v1008
    %v1189 = vsub.f32 %v756, %v1011
    %v1190 = vsub.f32 %v757, %v1014
    %v1191 = vsub.f32 %v782, %v1017
    %v1192 = vsub.f32 %v783, %v1020
    %v1193 = vsub.f32 %v784, %v1023
    %v1194 = vsub.f32 %v785, %v1026
    %v1195 = vsub.f32 %v786, %v1029
    %v1196 = vsub.f32 %v787, %v1032
    %v1197 = vsub.f32 %v788, %v1035
    %v1198 = vsub.f32 %v789, %v1038
    %v1199 = vsub.f32 %v814, %v1041
    %v1200 = vsub.f32 %v815, %v1044
    %v1201 = vsub.f32 %v816, %v1047
    %v1202 = vsub.f32 %v817, %v1050
    %v1203 = vsub.f32 %v818, %v1053
    %v1204 = vsub.f32 %v819, %v1056
    %v1205 = vsub.f32 %v820, %v1059
    %v1206 = vsub.f32 %v821, %v1062
    %v1207 = vsub.f32 %v846, %v1065
    %v1208 = vsub.f32 %v847, %v1068
    %v1209 = vsub.f32 %v848, %v1071
    %v1210 = vsub.f32 %v849, %v1074
    %v1211 = vsub.f32 %v850, %v1077
    %v1212 = vsub.f32 %v851, %v1080
    %v1213 = vsub.f32 %v852, %v1083
    %v1214 = vsub.f32 %v853, %v1086
    %v1215 = vsub.f32 %v878, %v1089
    %v1216 = vsub.f32 %v879, %v1092
    %v1217 = vsub.f32 %v880, %v1095
    %v1218 = vsub.f32 %v881, %v1098
    %v1219 = vsub.f32 %v882, %v1101
    %v1220 = vsub.f32 %v883, %v1104
    %v1221 = vsub.f32 %v884, %v1107
    %v1222 = vsub.f32 %v885, %v1110
    %v1223 = vsub.f32 %v910, %v1113
    %v1224 = vsub.f32 %v911, %v1116
    %v1225 = vsub.f32 %v912, %v1119
    %v1226 = vsub.f32 %v913, %v1122
    %v1227 = vsub.f32 %v914, %v1125
    %v1228 = vsub.f32 %v915, %v1128
    %v1229 = vsub.f32 %v916, %v1131
    %v1230 = vsub.f32 %v917, %v1134
    %v1231 = vsub.f32 %v942, %v1137
    %v1232 = vsub.f32 %v943, %v1140
    %v1233 = vsub.f32 %v944, %v1143
    %v1234 = vsub.f32 %v945, %v1146
    %v1235 = vsub.f32 %v946, %v1149
    %v1236 = vsub.f32 %v947, %v1152
    %v1237 = vsub.f32 %v948, %v1155
    %v1238 = vsub.f32 %v949, %v1158
    %v1239 = vsub.f32 %v974, %v1161
    %v1240 = vsub.f32 %v975, %v1164
    %v1241 = vsub.f32 %v976, %v1167
    %v1242 = vsub.f32 %v977, %v1170
    %v1243 = vsub.f32 %v978, %v1173
    %v1244 = vsub.f32 %v979, %v1176
    %v1245 = vsub.f32 %v980, %v1179
    %v1246 = vsub.f32 %v981, %v1182
    %v1247 = vmul.f32 %v1183, 1.442695
    %v1248 = vpow.pop %v1247
    %v1249 = vmul.f32 %v1184, 1.442695
    %v1250 = vpow.pop %v1249
    %v1251 = vmul.f32 %v1185, 1.442695
    %v1252 = vpow.pop %v1251
    %v1253 = vmul.f32 %v1186, 1.442695
    %v1254 = vpow.pop %v1253
    %v1255 = vmul.f32 %v1187, 1.442695
    %v1256 = vpow.pop %v1255
    %v1257 = vmul.f32 %v1188, 1.442695
    %v1258 = vpow.pop %v1257
    %v1259 = vmul.f32 %v1189, 1.442695
    %v1260 = vpow.pop %v1259
    %v1261 = vmul.f32 %v1190, 1.442695
    %v1262 = vpow.pop %v1261
    %v1263 = vmul.f32 %v1191, 1.442695
    %v1264 = vpow.pop %v1263
    %v1265 = vmul.f32 %v1192, 1.442695
    %v1266 = vpow.pop %v1265
    %v1267 = vmul.f32 %v1193, 1.442695
    %v1268 = vpow.pop %v1267
    %v1269 = vmul.f32 %v1194, 1.442695
    %v1270 = vpow.pop %v1269
    %v1271 = vmul.f32 %v1195, 1.442695
    %v1272 = vpow.pop %v1271
    %v1273 = vmul.f32 %v1196, 1.442695
    %v1274 = vpow.pop %v1273
    %v1275 = vmul.f32 %v1197, 1.442695
    %v1276 = vpow.pop %v1275
    %v1277 = vmul.f32 %v1198, 1.442695
    %v1278 = vpow.pop %v1277
    %v1279 = vmul.f32 %v1199, 1.442695
    %v1280 = vpow.pop %v1279
    %v1281 = vmul.f32 %v1200, 1.442695
    %v1282 = vpow.pop %v1281
    %v1283 = vmul.f32 %v1201, 1.442695
    %v1284 = vpow.pop %v1283
    %v1285 = vmul.f32 %v1202, 1.442695
    %v1286 = vpow.pop %v1285
    %v1287 = vmul.f32 %v1203, 1.442695
    %v1288 = vpow.pop %v1287
    %v1289 = vmul.f32 %v1204, 1.442695
    %v1290 = vpow.pop %v1289
    %v1291 = vmul.f32 %v1205, 1.442695
    %v1292 = vpow.pop %v1291
    %v1293 = vmul.f32 %v1206, 1.442695
    %v1294 = vpow.pop %v1293
    %v1295 = vmul.f32 %v1207, 1.442695
    %v1296 = vpow.pop %v1295
    %v1297 = vmul.f32 %v1208, 1.442695
    %v1298 = vpow.pop %v1297
    %v1299 = vmul.f32 %v1209, 1.442695
    %v1300 = vpow.pop %v1299
    %v1301 = vmul.f32 %v1210, 1.442695
    %v1302 = vpow.pop %v1301
    %v1303 = vmul.f32 %v1211, 1.442695
    %v1304 = vpow.pop %v1303
    %v1305 = vmul.f32 %v1212, 1.442695
    %v1306 = vpow.pop %v1305
    %v1307 = vmul.f32 %v1213, 1.442695
    %v1308 = vpow.pop %v1307
    %v1309 = vmul.f32 %v1214, 1.442695
    %v1310 = vpow.pop %v1309
    %v1311 = vmul.f32 %v1215, 1.442695
    %v1312 = vpow.pop %v1311
    %v1313 = vmul.f32 %v1216, 1.442695
    %v1314 = vpow.pop %v1313
    %v1315 = vmul.f32 %v1217, 1.442695
    %v1316 = vpow.pop %v1315
    %v1317 = vmul.f32 %v1218, 1.442695
    %v1318 = vpow.pop %v1317
    %v1319 = vmul.f32 %v1219, 1.442695
    %v1320 = vpow.pop %v1319
    %v1321 = vmul.f32 %v1220, 1.442695
    %v1322 = vpow.pop %v1321
    %v1323 = vmul.f32 %v1221, 1.442695
    %v1324 = vpow.pop %v1323
    %v1325 = vmul.f32 %v1222, 1.442695
    %v1326 = vpow.pop %v1325
    %v1327 = vmul.f32 %v1223, 1.442695
    %v1328 = vpow.pop %v1327
    %v1329 = vmul.f32 %v1224, 1.442695
    %v1330 = vpow.pop %v1329
    %v1331 = vmul.f32 %v1225, 1.442695
    %v1332 = vpow.pop %v1331
    %v1333 = vmul.f32 %v1226, 1.442695
    %v1334 = vpow.pop %v1333
    %v1335 = vmul.f32 %v1227, 1.442695
    %v1336 = vpow.pop %v1335
    %v1337 = vmul.f32 %v1228, 1.442695
    %v1338 = vpow.pop %v1337
    %v1339 = vmul.f32 %v1229, 1.442695
    %v1340 = vpow.pop %v1339
    %v1341 = vmul.f32 %v1230, 1.442695
    %v1342 = vpow.pop %v1341
    %v1343 = vmul.f32 %v1231, 1.442695
    %v1344 = vpow.pop %v1343
    %v1345 = vmul.f32 %v1232, 1.442695
    %v1346 = vpow.pop %v1345
    %v1347 = vmul.f32 %v1233, 1.442695
    %v1348 = vpow.pop %v1347
    %v1349 = vmul.f32 %v1234, 1.442695
    %v1350 = vpow.pop %v1349
    %v1351 = vmul.f32 %v1235, 1.442695
    %v1352 = vpow.pop %v1351
    %v1353 = vmul.f32 %v1236, 1.442695
    %v1354 = vpow.pop %v1353
    %v1355 = vmul.f32 %v1237, 1.442695
    %v1356 = vpow.pop %v1355
    %v1357 = vmul.f32 %v1238, 1.442695
    %v1358 = vpow.pop %v1357
    %v1359 = vmul.f32 %v1239, 1.442695
    %v1360 = vpow.pop %v1359
    %v1361 = vmul.f32 %v1240, 1.442695
    %v1362 = vpow.pop %v1361
    %v1363 = vmul.f32 %v1241, 1.442695
    %v1364 = vpow.pop %v1363
    %v1365 = vmul.f32 %v1242, 1.442695
    %v1366 = vpow.pop %v1365
    %v1367 = vmul.f32 %v1243, 1.442695
    %v1368 = vpow.pop %v1367
    %v1369 = vmul.f32 %v1244, 1.442695
    %v1370 = vpow.pop %v1369
    %v1371 = vmul.f32 %v1245, 1.442695
    %v1372 = vpow.pop %v1371
    %v1373 = vmul.f32 %v1246, 1.442695
    %v1374 = vpow.pop %v1373
    %v1375 = vsel %vm990, %v1248, 0.0
    %1376 = vadd.xlane.f32.xlu0 %v1375
    %v1377 = vpop.xlane.xlu0 %1376
    %v1378 = vsel %vm990, %v1250, 0.0
    %1379 = vadd.xlane.f32.xlu0 %v1378
    %v1380 = vpop.xlane.xlu0 %1379
    %v1381 = vsel %vm990, %v1252, 0.0
    %1382 = vadd.xlane.f32.xlu0 %v1381
    %v1383 = vpop.xlane.xlu0 %1382
    %v1384 = vsel %vm990, %v1254, 0.0
    %1385 = vadd.xlane.f32.xlu0 %v1384
    %v1386 = vpop.xlane.xlu0 %1385
    %v1387 = vsel %vm990, %v1256, 0.0
    %1388 = vadd.xlane.f32.xlu0 %v1387
    %v1389 = vpop.xlane.xlu0 %1388
    %v1390 = vsel %vm990, %v1258, 0.0
    %1391 = vadd.xlane.f32.xlu0 %v1390
    %v1392 = vpop.xlane.xlu0 %1391
    %v1393 = vsel %vm990, %v1260, 0.0
    %1394 = vadd.xlane.f32.xlu0 %v1393
    %v1395 = vpop.xlane.xlu0 %1394
    %v1396 = vsel %vm990, %v1262, 0.0
    %1397 = vadd.xlane.f32.xlu0 %v1396
    %v1398 = vpop.xlane.xlu0 %1397
    %v1399 = vsel %vm990, %v1264, 0.0
    %1400 = vadd.xlane.f32.xlu0 %v1399
    %v1401 = vpop.xlane.xlu0 %1400
    %v1402 = vsel %vm990, %v1266, 0.0
    %1403 = vadd.xlane.f32.xlu0 %v1402
    %v1404 = vpop.xlane.xlu0 %1403
    %v1405 = vsel %vm990, %v1268, 0.0
    %1406 = vadd.xlane.f32.xlu0 %v1405
    %v1407 = vpop.xlane.xlu0 %1406
    %v1408 = vsel %vm990, %v1270, 0.0
    %1409 = vadd.xlane.f32.xlu0 %v1408
    %v1410 = vpop.xlane.xlu0 %1409
    %v1411 = vsel %vm990, %v1272, 0.0
    %1412 = vadd.xlane.f32.xlu0 %v1411
    %v1413 = vpop.xlane.xlu0 %1412
    %v1414 = vsel %vm990, %v1274, 0.0
    %1415 = vadd.xlane.f32.xlu0 %v1414
    %v1416 = vpop.xlane.xlu0 %1415
    %v1417 = vsel %vm990, %v1276, 0.0
    %1418 = vadd.xlane.f32.xlu0 %v1417
    %v1419 = vpop.xlane.xlu0 %1418
    %v1420 = vsel %vm990, %v1278, 0.0
    %1421 = vadd.xlane.f32.xlu0 %v1420
    %v1422 = vpop.xlane.xlu0 %1421
    %v1423 = vsel %vm990, %v1280, 0.0
    %1424 = vadd.xlane.f32.xlu0 %v1423
    %v1425 = vpop.xlane.xlu0 %1424
    %v1426 = vsel %vm990, %v1282, 0.0
    %1427 = vadd.xlane.f32.xlu0 %v1426
    %v1428 = vpop.xlane.xlu0 %1427
    %v1429 = vsel %vm990, %v1284, 0.0
    %1430 = vadd.xlane.f32.xlu0 %v1429
    %v1431 = vpop.xlane.xlu0 %1430
    %v1432 = vsel %vm990, %v1286, 0.0
    %1433 = vadd.xlane.f32.xlu0 %v1432
    %v1434 = vpop.xlane.xlu0 %1433
    %v1435 = vsel %vm990, %v1288, 0.0
    %1436 = vadd.xlane.f32.xlu0 %v1435
    %v1437 = vpop.xlane.xlu0 %1436
    %v1438 = vsel %vm990, %v1290, 0.0
    %1439 = vadd.xlane.f32.xlu0 %v1438
    %v1440 = vpop.xlane.xlu0 %1439
    %v1441 = vsel %vm990, %v1292, 0.0
    %1442 = vadd.xlane.f32.xlu0 %v1441
    %v1443 = vpop.xlane.xlu0 %1442
    %v1444 = vsel %vm990, %v1294, 0.0
    %1445 = vadd.xlane.f32.xlu0 %v1444
    %v1446 = vpop.xlane.xlu0 %1445
    %v1447 = vsel %vm990, %v1296, 0.0
    %1448 = vadd.xlane.f32.xlu0 %v1447
    %v1449 = vpop.xlane.xlu0 %1448
    %v1450 = vsel %vm990, %v1298, 0.0
    %1451 = vadd.xlane.f32.xlu0 %v1450
    %v1452 = vpop.xlane.xlu0 %1451
    %v1453 = vsel %vm990, %v1300, 0.0
    %1454 = vadd.xlane.f32.xlu0 %v1453
    %v1455 = vpop.xlane.xlu0 %1454
    %v1456 = vsel %vm990, %v1302, 0.0
    %1457 = vadd.xlane.f32.xlu0 %v1456
    %v1458 = vpop.xlane.xlu0 %1457
    %v1459 = vsel %vm990, %v1304, 0.0
    %1460 = vadd.xlane.f32.xlu0 %v1459
    %v1461 = vpop.xlane.xlu0 %1460
    %v1462 = vsel %vm990, %v1306, 0.0
    %1463 = vadd.xlane.f32.xlu0 %v1462
    %v1464 = vpop.xlane.xlu0 %1463
    %v1465 = vsel %vm990, %v1308, 0.0
    %1466 = vadd.xlane.f32.xlu0 %v1465
    %v1467 = vpop.xlane.xlu0 %1466
    %v1468 = vsel %vm990, %v1310, 0.0
    %1469 = vadd.xlane.f32.xlu0 %v1468
    %v1470 = vpop.xlane.xlu0 %1469
    %v1471 = vsel %vm990, %v1312, 0.0
    %1472 = vadd.xlane.f32.xlu0 %v1471
    %v1473 = vpop.xlane.xlu0 %1472
    %v1474 = vsel %vm990, %v1314, 0.0
    %1475 = vadd.xlane.f32.xlu0 %v1474
    %v1476 = vpop.xlane.xlu0 %1475
    %v1477 = vsel %vm990, %v1316, 0.0
    %1478 = vadd.xlane.f32.xlu0 %v1477
    %v1479 = vpop.xlane.xlu0 %1478
    %v1480 = vsel %vm990, %v1318, 0.0
    %1481 = vadd.xlane.f32.xlu0 %v1480
    %v1482 = vpop.xlane.xlu0 %1481
    %v1483 = vsel %vm990, %v1320, 0.0
    %1484 = vadd.xlane.f32.xlu0 %v1483
    %v1485 = vpop.xlane.xlu0 %1484
    %v1486 = vsel %vm990, %v1322, 0.0
    %1487 = vadd.xlane.f32.xlu0 %v1486
    %v1488 = vpop.xlane.xlu0 %1487
    %v1489 = vsel %vm990, %v1324, 0.0
    %1490 = vadd.xlane.f32.xlu0 %v1489
    %v1491 = vpop.xlane.xlu0 %1490
    %v1492 = vsel %vm990, %v1326, 0.0
    %1493 = vadd.xlane.f32.xlu0 %v1492
    %v1494 = vpop.xlane.xlu0 %1493
    %v1495 = vsel %vm990, %v1328, 0.0
    %1496 = vadd.xlane.f32.xlu0 %v1495
    %v1497 = vpop.xlane.xlu0 %1496
    %v1498 = vsel %vm990, %v1330, 0.0
    %1499 = vadd.xlane.f32.xlu0 %v1498
    %v1500 = vpop.xlane.xlu0 %1499
    %v1501 = vsel %vm990, %v1332, 0.0
    %1502 = vadd.xlane.f32.xlu0 %v1501
    %v1503 = vpop.xlane.xlu0 %1502
    %v1504 = vsel %vm990, %v1334, 0.0
    %1505 = vadd.xlane.f32.xlu0 %v1504
    %v1506 = vpop.xlane.xlu0 %1505
    %v1507 = vsel %vm990, %v1336, 0.0
    %1508 = vadd.xlane.f32.xlu0 %v1507
    %v1509 = vpop.xlane.xlu0 %1508
    %v1510 = vsel %vm990, %v1338, 0.0
    %1511 = vadd.xlane.f32.xlu0 %v1510
    %v1512 = vpop.xlane.xlu0 %1511
    %v1513 = vsel %vm990, %v1340, 0.0
    %1514 = vadd.xlane.f32.xlu0 %v1513
    %v1515 = vpop.xlane.xlu0 %1514
    %v1516 = vsel %vm990, %v1342, 0.0
    %1517 = vadd.xlane.f32.xlu0 %v1516
    %v1518 = vpop.xlane.xlu0 %1517
    %v1519 = vsel %vm990, %v1344, 0.0
    %1520 = vadd.xlane.f32.xlu0 %v1519
    %v1521 = vpop.xlane.xlu0 %1520
    %v1522 = vsel %vm990, %v1346, 0.0
    %1523 = vadd.xlane.f32.xlu0 %v1522
    %v1524 = vpop.xlane.xlu0 %1523
    %v1525 = vsel %vm990, %v1348, 0.0
    %1526 = vadd.xlane.f32.xlu0 %v1525
    %v1527 = vpop.xlane.xlu0 %1526
    %v1528 = vsel %vm990, %v1350, 0.0
    %1529 = vadd.xlane.f32.xlu0 %v1528
    %v1530 = vpop.xlane.xlu0 %1529
    %v1531 = vsel %vm990, %v1352, 0.0
    %1532 = vadd.xlane.f32.xlu0 %v1531
    %v1533 = vpop.xlane.xlu0 %1532
    %v1534 = vsel %vm990, %v1354, 0.0
    %1535 = vadd.xlane.f32.xlu0 %v1534
    %v1536 = vpop.xlane.xlu0 %1535
    %v1537 = vsel %vm990, %v1356, 0.0
    %1538 = vadd.xlane.f32.xlu0 %v1537
    %v1539 = vpop.xlane.xlu0 %1538
    %v1540 = vsel %vm990, %v1358, 0.0
    %1541 = vadd.xlane.f32.xlu0 %v1540
    %v1542 = vpop.xlane.xlu0 %1541
    %v1543 = vsel %vm990, %v1360, 0.0
    %1544 = vadd.xlane.f32.xlu0 %v1543
    %v1545 = vpop.xlane.xlu0 %1544
    %v1546 = vsel %vm990, %v1362, 0.0
    %1547 = vadd.xlane.f32.xlu0 %v1546
    %v1548 = vpop.xlane.xlu0 %1547
    %v1549 = vsel %vm990, %v1364, 0.0
    %1550 = vadd.xlane.f32.xlu0 %v1549
    %v1551 = vpop.xlane.xlu0 %1550
    %v1552 = vsel %vm990, %v1366, 0.0
    %1553 = vadd.xlane.f32.xlu0 %v1552
    %v1554 = vpop.xlane.xlu0 %1553
    %v1555 = vsel %vm990, %v1368, 0.0
    %1556 = vadd.xlane.f32.xlu0 %v1555
    %v1557 = vpop.xlane.xlu0 %1556
    %v1558 = vsel %vm990, %v1370, 0.0
    %1559 = vadd.xlane.f32.xlu0 %v1558
    %v1560 = vpop.xlane.xlu0 %1559
    %v1561 = vsel %vm990, %v1372, 0.0
    %1562 = vadd.xlane.f32.xlu0 %v1561
    %v1563 = vpop.xlane.xlu0 %1562
    %v1564 = vsel %vm990, %v1374, 0.0
    %1565 = vadd.xlane.f32.xlu0 %v1564
    %v1566 = vpop.xlane.xlu0 %1565
    %v1567 = vrcp.pop %v1377
    %v1568 = vrcp.pop %v1380
    %v1569 = vrcp.pop %v1383
    %v1570 = vrcp.pop %v1386
    %v1571 = vrcp.pop %v1389
    %v1572 = vrcp.pop %v1392
    %v1573 = vrcp.pop %v1395
    %v1574 = vrcp.pop %v1398
    %v1575 = vrcp.pop %v1401
    %v1576 = vrcp.pop %v1404
    %v1577 = vrcp.pop %v1407
    %v1578 = vrcp.pop %v1410
    %v1579 = vrcp.pop %v1413
    %v1580 = vrcp.pop %v1416
    %v1581 = vrcp.pop %v1419
    %v1582 = vrcp.pop %v1422
    %v1583 = vrcp.pop %v1425
    %v1584 = vrcp.pop %v1428
    %v1585 = vrcp.pop %v1431
    %v1586 = vrcp.pop %v1434
    %v1587 = vrcp.pop %v1437
    %v1588 = vrcp.pop %v1440
    %v1589 = vrcp.pop %v1443
    %v1590 = vrcp.pop %v1446
    %v1591 = vrcp.pop %v1449
    %v1592 = vrcp.pop %v1452
    %v1593 = vrcp.pop %v1455
    %v1594 = vrcp.pop %v1458
    %v1595 = vrcp.pop %v1461
    %v1596 = vrcp.pop %v1464
    %v1597 = vrcp.pop %v1467
    %v1598 = vrcp.pop %v1470
    %v1599 = vrcp.pop %v1473
    %v1600 = vrcp.pop %v1476
    %v1601 = vrcp.pop %v1479
    %v1602 = vrcp.pop %v1482
    %v1603 = vrcp.pop %v1485
    %v1604 = vrcp.pop %v1488
    %v1605 = vrcp.pop %v1491
    %v1606 = vrcp.pop %v1494
    %v1607 = vrcp.pop %v1497
    %v1608 = vrcp.pop %v1500
    %v1609 = vrcp.pop %v1503
    %v1610 = vrcp.pop %v1506
    %v1611 = vrcp.pop %v1509
    %v1612 = vrcp.pop %v1512
    %v1613 = vrcp.pop %v1515
    %v1614 = vrcp.pop %v1518
    %v1615 = vrcp.pop %v1521
    %v1616 = vrcp.pop %v1524
    %v1617 = vrcp.pop %v1527
    %v1618 = vrcp.pop %v1530
    %v1619 = vrcp.pop %v1533
    %v1620 = vrcp.pop %v1536
    %v1621 = vrcp.pop %v1539
    %v1622 = vrcp.pop %v1542
    %v1623 = vrcp.pop %v1545
    %v1624 = vrcp.pop %v1548
    %v1625 = vrcp.pop %v1551
    %v1626 = vrcp.pop %v1554
    %v1627 = vrcp.pop %v1557
    %v1628 = vrcp.pop %v1560
    %v1629 = vrcp.pop %v1563
    %v1630 = vrcp.pop %v1566
    %v1631 = vmul.f32 %v1248, %v1567
    %v1632 = vmul.f32 %v1250, %v1568
    %v1633 = vmul.f32 %v1252, %v1569
    %v1634 = vmul.f32 %v1254, %v1570
    %v1635 = vmul.f32 %v1256, %v1571
    %v1636 = vmul.f32 %v1258, %v1572
    %v1637 = vmul.f32 %v1260, %v1573
    %v1638 = vmul.f32 %v1262, %v1574
    %v1639 = vmul.f32 %v1264, %v1575
    %v1640 = vmul.f32 %v1266, %v1576
    %v1641 = vmul.f32 %v1268, %v1577
    %v1642 = vmul.f32 %v1270, %v1578
    %v1643 = vmul.f32 %v1272, %v1579
    %v1644 = vmul.f32 %v1274, %v1580
    %v1645 = vmul.f32 %v1276, %v1581
    %v1646 = vmul.f32 %v1278, %v1582
    %v1647 = vmul.f32 %v1280, %v1583
    %v1648 = vmul.f32 %v1282, %v1584
    %v1649 = vmul.f32 %v1284, %v1585
    %v1650 = vmul.f32 %v1286, %v1586
    %v1651 = vmul.f32 %v1288, %v1587
    %v1652 = vmul.f32 %v1290, %v1588
    %v1653 = vmul.f32 %v1292, %v1589
    %v1654 = vmul.f32 %v1294, %v1590
    %v1655 = vmul.f32 %v1296, %v1591
    %v1656 = vmul.f32 %v1298, %v1592
    %v1657 = vmul.f32 %v1300, %v1593
    %v1658 = vmul.f32 %v1302, %v1594
    %v1659 = vmul.f32 %v1304, %v1595
    %v1660 = vmul.f32 %v1306, %v1596
    %v1661 = vmul.f32 %v1308, %v1597
    %v1662 = vmul.f32 %v1310, %v1598
    %v1663 = vmul.f32 %v1312, %v1599
    %v1664 = vmul.f32 %v1314, %v1600
    %v1665 = vmul.f32 %v1316, %v1601
    %v1666 = vmul.f32 %v1318, %v1602
    %v1667 = vmul.f32 %v1320, %v1603
    %v1668 = vmul.f32 %v1322, %v1604
    %v1669 = vmul.f32 %v1324, %v1605
    %v1670 = vmul.f32 %v1326, %v1606
    %v1671 = vmul.f32 %v1328, %v1607
    %v1672 = vmul.f32 %v1330, %v1608
    %v1673 = vmul.f32 %v1332, %v1609
    %v1674 = vmul.f32 %v1334, %v1610
    %v1675 = vmul.f32 %v1336, %v1611
    %v1676 = vmul.f32 %v1338, %v1612
    %v1677 = vmul.f32 %v1340, %v1613
    %v1678 = vmul.f32 %v1342, %v1614
    %v1679 = vmul.f32 %v1344, %v1615
    %v1680 = vmul.f32 %v1346, %v1616
    %v1681 = vmul.f32 %v1348, %v1617
    %v1682 = vmul.f32 %v1350, %v1618
    %v1683 = vmul.f32 %v1352, %v1619
    %v1684 = vmul.f32 %v1354, %v1620
    %v1685 = vmul.f32 %v1356, %v1621
    %v1686 = vmul.f32 %v1358, %v1622
    %v1687 = vmul.f32 %v1360, %v1623
    %v1688 = vmul.f32 %v1362, %v1624
    %v1689 = vmul.f32 %v1364, %v1625
    %v1690 = vmul.f32 %v1366, %v1626
    %v1691 = vmul.f32 %v1368, %v1627
    %v1692 = vmul.f32 %v1370, %v1628
    %v1693 = vmul.f32 %v1372, %v1629
    %v1694 = vmul.f32 %v1374, %v1630
    %v1696 = vsel %vm990, %v1631, 0
    %v1699 = vsel %vm990, %v1632, 0
    %v1702 = vsel %vm990, %v1633, 0
    %v1705 = vsel %vm990, %v1634, 0
    %v1708 = vsel %vm990, %v1635, 0
    %v1711 = vsel %vm990, %v1636, 0
    %v1714 = vsel %vm990, %v1637, 0
    %v1717 = vsel %vm990, %v1638, 0
    %1719 = vmatpush.msra.mxu0 0.0
    %1720 = vmatpush.msra.mxu0 0.0
    %1721 = vmatpush.msra.mxu0 0.0
    %1722 = vmatpush.msra.mxu0 0.0
    %1723 = vmatpush.msra.mxu0 0.0
    %1724 = vmatpush.msra.mxu0 0.0
    %1725 = vmatpush.msra.mxu0 0.0
    %1726 = vmatpush.msra.mxu0 0.0
    %1727 = vmatpush.msra.mxu0 0.0
    %1728 = vmatpush.msra.mxu0 0.0
    %1729 = vmatpush.msra.mxu0 0.0
    %1730 = vmatpush.msra.mxu0 0.0
    %1731 = vmatpush.msra.mxu0 0.0
    %1732 = vmatpush.msra.mxu0 0.0
    %1733 = vmatpush.msra.mxu0 %v589
    %1734 = vmatpush.msra.mxu0 %v586
    %1735 = vmatmul.f32.gmra.mxu0 %v1696
    %v1736 = vpop.f32.mrf.mxu0
    %v1737 = vadd.f32 0.0, %v1736
    %1738 = vmatmul.f32.gmra.mxu0 %v1699
    %v1739 = vpop.f32.mrf.mxu0
    %v1740 = vadd.f32 0.0, %v1739
    %1741 = vmatmul.f32.gmra.mxu0 %v1702
    %v1742 = vpop.f32.mrf.mxu0
    %v1743 = vadd.f32 0.0, %v1742
    %1744 = vmatmul.f32.gmra.mxu0 %v1705
    %v1745 = vpop.f32.mrf.mxu0
    %v1746 = vadd.f32 0.0, %v1745
    %1747 = vmatmul.f32.gmra.mxu0 %v1708
    %v1748 = vpop.f32.mrf.mxu0
    %v1749 = vadd.f32 0.0, %v1748
    %1750 = vmatmul.f32.gmra.mxu0 %v1711
    %v1751 = vpop.f32.mrf.mxu0
    %v1752 = vadd.f32 0.0, %v1751
    %1753 = vmatmul.f32.gmra.mxu0 %v1714
    %v1754 = vpop.f32.mrf.mxu0
    %v1755 = vadd.f32 0.0, %v1754
    %1756 = vmatmul.f32.gmra.mxu0 %v1717
    %v1757 = vpop.f32.mrf.mxu0
    %v1758 = vadd.f32 0.0, %v1757
    %1759 = vdwg.mxu0
    %v1761 = vsel %vm990, %v1639, 0
    %v1764 = vsel %vm990, %v1640, 0
    %v1767 = vsel %vm990, %v1641, 0
    %v1770 = vsel %vm990, %v1642, 0
    %v1773 = vsel %vm990, %v1643, 0
    %v1776 = vsel %vm990, %v1644, 0
    %v1779 = vsel %vm990, %v1645, 0
    %v1782 = vsel %vm990, %v1646, 0
    %1784 = vmatpush.msra.mxu0 0.0
    %1785 = vmatpush.msra.mxu0 0.0
    %1786 = vmatpush.msra.mxu0 0.0
    %1787 = vmatpush.msra.mxu0 0.0
    %1788 = vmatpush.msra.mxu0 0.0
    %1789 = vmatpush.msra.mxu0 0.0
    %1790 = vmatpush.msra.mxu0 0.0
    %1791 = vmatpush.msra.mxu0 0.0
    %1792 = vmatpush.msra.mxu0 0.0
    %1793 = vmatpush.msra.mxu0 0.0
    %1794 = vmatpush.msra.mxu0 0.0
    %1795 = vmatpush.msra.mxu0 0.0
    %1796 = vmatpush.msra.mxu0 0.0
    %1797 = vmatpush.msra.mxu0 0.0
    %1798 = vmatpush.msra.mxu0 %v595
    %1799 = vmatpush.msra.mxu0 %v592
    %1800 = vmatmul.f32.gmra.mxu0 %v1761
    %v1801 = vpop.f32.mrf.mxu0
    %v1802 = vadd.f32 0.0, %v1801
    %1803 = vmatmul.f32.gmra.mxu0 %v1764
    %v1804 = vpop.f32.mrf.mxu0
    %v1805 = vadd.f32 0.0, %v1804
    %1806 = vmatmul.f32.gmra.mxu0 %v1767
    %v1807 = vpop.f32.mrf.mxu0
    %v1808 = vadd.f32 0.0, %v1807
    %1809 = vmatmul.f32.gmra.mxu0 %v1770
    %v1810 = vpop.f32.mrf.mxu0
    %v1811 = vadd.f32 0.0, %v1810
    %1812 = vmatmul.f32.gmra.mxu0 %v1773
    %v1813 = vpop.f32.mrf.mxu0
    %v1814 = vadd.f32 0.0, %v1813
    %1815 = vmatmul.f32.gmra.mxu0 %v1776
    %v1816 = vpop.f32.mrf.mxu0
    %v1817 = vadd.f32 0.0, %v1816
    %1818 = vmatmul.f32.gmra.mxu0 %v1779
    %v1819 = vpop.f32.mrf.mxu0
    %v1820 = vadd.f32 0.0, %v1819
    %1821 = vmatmul.f32.gmra.mxu0 %v1782
    %v1822 = vpop.f32.mrf.mxu0
    %v1823 = vadd.f32 0.0, %v1822
    %1824 = vdwg.mxu0
    %v1826 = vsel %vm990, %v1647, 0
    %v1829 = vsel %vm990, %v1648, 0
    %v1832 = vsel %vm990, %v1649, 0
    %v1835 = vsel %vm990, %v1650, 0
    %v1838 = vsel %vm990, %v1651, 0
    %v1841 = vsel %vm990, %v1652, 0
    %v1844 = vsel %vm990, %v1653, 0
    %v1847 = vsel %vm990, %v1654, 0
    %1849 = vmatpush.msra.mxu0 0.0
    %1850 = vmatpush.msra.mxu0 0.0
    %1851 = vmatpush.msra.mxu0 0.0
    %1852 = vmatpush.msra.mxu0 0.0
    %1853 = vmatpush.msra.mxu0 0.0
    %1854 = vmatpush.msra.mxu0 0.0
    %1855 = vmatpush.msra.mxu0 0.0
    %1856 = vmatpush.msra.mxu0 0.0
    %1857 = vmatpush.msra.mxu0 0.0
    %1858 = vmatpush.msra.mxu0 0.0
    %1859 = vmatpush.msra.mxu0 0.0
    %1860 = vmatpush.msra.mxu0 0.0
    %1861 = vmatpush.msra.mxu0 0.0
    %1862 = vmatpush.msra.mxu0 0.0
    %1863 = vmatpush.msra.mxu0 %v601
    %1864 = vmatpush.msra.mxu0 %v598
    %1865 = vmatmul.f32.gmra.mxu0 %v1826
    %v1866 = vpop.f32.mrf.mxu0
    %v1867 = vadd.f32 0.0, %v1866
    %1868 = vmatmul.f32.gmra.mxu0 %v1829
    %v1869 = vpop.f32.mrf.mxu0
    %v1870 = vadd.f32 0.0, %v1869
    %1871 = vmatmul.f32.gmra.mxu0 %v1832
    %v1872 = vpop.f32.mrf.mxu0
    %v1873 = vadd.f32 0.0, %v1872
    %1874 = vmatmul.f32.gmra.mxu0 %v1835
    %v1875 = vpop.f32.mrf.mxu0
    %v1876 = vadd.f32 0.0, %v1875
    %1877 = vmatmul.f32.gmra.mxu0 %v1838
    %v1878 = vpop.f32.mrf.mxu0
    %v1879 = vadd.f32 0.0, %v1878
    %1880 = vmatmul.f32.gmra.mxu0 %v1841
    %v1881 = vpop.f32.mrf.mxu0
    %v1882 = vadd.f32 0.0, %v1881
    %1883 = vmatmul.f32.gmra.mxu0 %v1844
    %v1884 = vpop.f32.mrf.mxu0
    %v1885 = vadd.f32 0.0, %v1884
    %1886 = vmatmul.f32.gmra.mxu0 %v1847
    %v1887 = vpop.f32.mrf.mxu0
    %v1888 = vadd.f32 0.0, %v1887
    %1889 = vdwg.mxu0
    %v1891 = vsel %vm990, %v1655, 0
    %v1894 = vsel %vm990, %v1656, 0
    %v1897 = vsel %vm990, %v1657, 0
    %v1900 = vsel %vm990, %v1658, 0
    %v1903 = vsel %vm990, %v1659, 0
    %v1906 = vsel %vm990, %v1660, 0
    %v1909 = vsel %vm990, %v1661, 0
    %v1912 = vsel %vm990, %v1662, 0
    %1914 = vmatpush.msra.mxu0 0.0
    %1915 = vmatpush.msra.mxu0 0.0
    %1916 = vmatpush.msra.mxu0 0.0
    %1917 = vmatpush.msra.mxu0 0.0
    %1918 = vmatpush.msra.mxu0 0.0
    %1919 = vmatpush.msra.mxu0 0.0
    %1920 = vmatpush.msra.mxu0 0.0
    %1921 = vmatpush.msra.mxu0 0.0
    %1922 = vmatpush.msra.mxu0 0.0
    %1923 = vmatpush.msra.mxu0 0.0
    %1924 = vmatpush.msra.mxu0 0.0
    %1925 = vmatpush.msra.mxu0 0.0
    %1926 = vmatpush.msra.mxu0 0.0
    %1927 = vmatpush.msra.mxu0 0.0
    %1928 = vmatpush.msra.mxu0 %v607
    %1929 = vmatpush.msra.mxu0 %v604
    %1930 = vmatmul.f32.gmra.mxu0 %v1891
    %v1931 = vpop.f32.mrf.mxu0
    %v1932 = vadd.f32 0.0, %v1931
    %1933 = vmatmul.f32.gmra.mxu0 %v1894
    %v1934 = vpop.f32.mrf.mxu0
    %v1935 = vadd.f32 0.0, %v1934
    %1936 = vmatmul.f32.gmra.mxu0 %v1897
    %v1937 = vpop.f32.mrf.mxu0
    %v1938 = vadd.f32 0.0, %v1937
    %1939 = vmatmul.f32.gmra.mxu0 %v1900
    %v1940 = vpop.f32.mrf.mxu0
    %v1941 = vadd.f32 0.0, %v1940
    %1942 = vmatmul.f32.gmra.mxu0 %v1903
    %v1943 = vpop.f32.mrf.mxu0
    %v1944 = vadd.f32 0.0, %v1943
    %1945 = vmatmul.f32.gmra.mxu0 %v1906
    %v1946 = vpop.f32.mrf.mxu0
    %v1947 = vadd.f32 0.0, %v1946
    %1948 = vmatmul.f32.gmra.mxu0 %v1909
    %v1949 = vpop.f32.mrf.mxu0
    %v1950 = vadd.f32 0.0, %v1949
    %1951 = vmatmul.f32.gmra.mxu0 %v1912
    %v1952 = vpop.f32.mrf.mxu0
    %v1953 = vadd.f32 0.0, %v1952
    %1954 = vdwg.mxu0
    %v1956 = vsel %vm990, %v1663, 0
    %v1959 = vsel %vm990, %v1664, 0
    %v1962 = vsel %vm990, %v1665, 0
    %v1965 = vsel %vm990, %v1666, 0
    %v1968 = vsel %vm990, %v1667, 0
    %v1971 = vsel %vm990, %v1668, 0
    %v1974 = vsel %vm990, %v1669, 0
    %v1977 = vsel %vm990, %v1670, 0
    %1979 = vmatpush.msra.mxu0 0.0
    %1980 = vmatpush.msra.mxu0 0.0
    %1981 = vmatpush.msra.mxu0 0.0
    %1982 = vmatpush.msra.mxu0 0.0
    %1983 = vmatpush.msra.mxu0 0.0
    %1984 = vmatpush.msra.mxu0 0.0
    %1985 = vmatpush.msra.mxu0 0.0
    %1986 = vmatpush.msra.mxu0 0.0
    %1987 = vmatpush.msra.mxu0 0.0
    %1988 = vmatpush.msra.mxu0 0.0
    %1989 = vmatpush.msra.mxu0 0.0
    %1990 = vmatpush.msra.mxu0 0.0
    %1991 = vmatpush.msra.mxu0 0.0
    %1992 = vmatpush.msra.mxu0 0.0
    %1993 = vmatpush.msra.mxu0 %v613
    %1994 = vmatpush.msra.mxu0 %v610
    %1995 = vmatmul.f32.gmra.mxu0 %v1956
    %v1996 = vpop.f32.mrf.mxu0
    %v1997 = vadd.f32 0.0, %v1996
    %1998 = vmatmul.f32.gmra.mxu0 %v1959
    %v1999 = vpop.f32.mrf.mxu0
    %v2000 = vadd.f32 0.0, %v1999
    %2001 = vmatmul.f32.gmra.mxu0 %v1962
    %v2002 = vpop.f32.mrf.mxu0
    %v2003 = vadd.f32 0.0, %v2002
    %2004 = vmatmul.f32.gmra.mxu0 %v1965
    %v2005 = vpop.f32.mrf.mxu0
    %v2006 = vadd.f32 0.0, %v2005
    %2007 = vmatmul.f32.gmra.mxu0 %v1968
    %v2008 = vpop.f32.mrf.mxu0
    %v2009 = vadd.f32 0.0, %v2008
    %2010 = vmatmul.f32.gmra.mxu0 %v1971
    %v2011 = vpop.f32.mrf.mxu0
    %v2012 = vadd.f32 0.0, %v2011
    %2013 = vmatmul.f32.gmra.mxu0 %v1974
    %v2014 = vpop.f32.mrf.mxu0
    %v2015 = vadd.f32 0.0, %v2014
    %2016 = vmatmul.f32.gmra.mxu0 %v1977
    %v2017 = vpop.f32.mrf.mxu0
    %v2018 = vadd.f32 0.0, %v2017
    %2019 = vdwg.mxu0
    %v2021 = vsel %vm990, %v1671, 0
    %v2024 = vsel %vm990, %v1672, 0
    %v2027 = vsel %vm990, %v1673, 0
    %v2030 = vsel %vm990, %v1674, 0
    %v2033 = vsel %vm990, %v1675, 0
    %v2036 = vsel %vm990, %v1676, 0
    %v2039 = vsel %vm990, %v1677, 0
    %v2042 = vsel %vm990, %v1678, 0
    %2044 = vmatpush.msra.mxu0 0.0
    %2045 = vmatpush.msra.mxu0 0.0
    %2046 = vmatpush.msra.mxu0 0.0
    %2047 = vmatpush.msra.mxu0 0.0
    %2048 = vmatpush.msra.mxu0 0.0
    %2049 = vmatpush.msra.mxu0 0.0
    %2050 = vmatpush.msra.mxu0 0.0
    %2051 = vmatpush.msra.mxu0 0.0
    %2052 = vmatpush.msra.mxu0 0.0
    %2053 = vmatpush.msra.mxu0 0.0
    %2054 = vmatpush.msra.mxu0 0.0
    %2055 = vmatpush.msra.mxu0 0.0
    %2056 = vmatpush.msra.mxu0 0.0
    %2057 = vmatpush.msra.mxu0 0.0
    %2058 = vmatpush.msra.mxu0 %v619
    %2059 = vmatpush.msra.mxu0 %v616
    %2060 = vmatmul.f32.gmra.mxu0 %v2021
    %v2061 = vpop.f32.mrf.mxu0
    %v2062 = vadd.f32 0.0, %v2061
    %2063 = vmatmul.f32.gmra.mxu0 %v2024
    %v2064 = vpop.f32.mrf.mxu0
    %v2065 = vadd.f32 0.0, %v2064
    %2066 = vmatmul.f32.gmra.mxu0 %v2027
    %v2067 = vpop.f32.mrf.mxu0
    %v2068 = vadd.f32 0.0, %v2067
    %2069 = vmatmul.f32.gmra.mxu0 %v2030
    %v2070 = vpop.f32.mrf.mxu0
    %v2071 = vadd.f32 0.0, %v2070
    %2072 = vmatmul.f32.gmra.mxu0 %v2033
    %v2073 = vpop.f32.mrf.mxu0
    %v2074 = vadd.f32 0.0, %v2073
    %2075 = vmatmul.f32.gmra.mxu0 %v2036
    %v2076 = vpop.f32.mrf.mxu0
    %v2077 = vadd.f32 0.0, %v2076
    %2078 = vmatmul.f32.gmra.mxu0 %v2039
    %v2079 = vpop.f32.mrf.mxu0
    %v2080 = vadd.f32 0.0, %v2079
    %2081 = vmatmul.f32.gmra.mxu0 %v2042
    %v2082 = vpop.f32.mrf.mxu0
    %v2083 = vadd.f32 0.0, %v2082
    %2084 = vdwg.mxu0
    %v2086 = vsel %vm990, %v1679, 0
    %v2089 = vsel %vm990, %v1680, 0
    %v2092 = vsel %vm990, %v1681, 0
    %v2095 = vsel %vm990, %v1682, 0
    %v2098 = vsel %vm990, %v1683, 0
    %v2101 = vsel %vm990, %v1684, 0
    %v2104 = vsel %vm990, %v1685, 0
    %v2107 = vsel %vm990, %v1686, 0
    %2109 = vmatpush.msra.mxu0 0.0
    %2110 = vmatpush.msra.mxu0 0.0
    %2111 = vmatpush.msra.mxu0 0.0
    %2112 = vmatpush.msra.mxu0 0.0
    %2113 = vmatpush.msra.mxu0 0.0
    %2114 = vmatpush.msra.mxu0 0.0
    %2115 = vmatpush.msra.mxu0 0.0
    %2116 = vmatpush.msra.mxu0 0.0
    %2117 = vmatpush.msra.mxu0 0.0
    %2118 = vmatpush.msra.mxu0 0.0
    %2119 = vmatpush.msra.mxu0 0.0
    %2120 = vmatpush.msra.mxu0 0.0
    %2121 = vmatpush.msra.mxu0 0.0
    %2122 = vmatpush.msra.mxu0 0.0
    %2123 = vmatpush.msra.mxu0 %v625
    %2124 = vmatpush.msra.mxu0 %v622
    %2125 = vmatmul.f32.gmra.mxu0 %v2086
    %v2126 = vpop.f32.mrf.mxu0
    %v2127 = vadd.f32 0.0, %v2126
    %2128 = vmatmul.f32.gmra.mxu0 %v2089
    %v2129 = vpop.f32.mrf.mxu0
    %v2130 = vadd.f32 0.0, %v2129
    %2131 = vmatmul.f32.gmra.mxu0 %v2092
    %v2132 = vpop.f32.mrf.mxu0
    %v2133 = vadd.f32 0.0, %v2132
    %2134 = vmatmul.f32.gmra.mxu0 %v2095
    %v2135 = vpop.f32.mrf.mxu0
    %v2136 = vadd.f32 0.0, %v2135
    %2137 = vmatmul.f32.gmra.mxu0 %v2098
    %v2138 = vpop.f32.mrf.mxu0
    %v2139 = vadd.f32 0.0, %v2138
    %2140 = vmatmul.f32.gmra.mxu0 %v2101
    %v2141 = vpop.f32.mrf.mxu0
    %v2142 = vadd.f32 0.0, %v2141
    %2143 = vmatmul.f32.gmra.mxu0 %v2104
    %v2144 = vpop.f32.mrf.mxu0
    %v2145 = vadd.f32 0.0, %v2144
    %2146 = vmatmul.f32.gmra.mxu0 %v2107
    %v2147 = vpop.f32.mrf.mxu0
    %v2148 = vadd.f32 0.0, %v2147
    %2149 = vdwg.mxu0
    %v2151 = vsel %vm990, %v1687, 0
    %v2154 = vsel %vm990, %v1688, 0
    %v2157 = vsel %vm990, %v1689, 0
    %v2160 = vsel %vm990, %v1690, 0
    %v2163 = vsel %vm990, %v1691, 0
    %v2166 = vsel %vm990, %v1692, 0
    %v2169 = vsel %vm990, %v1693, 0
    %v2172 = vsel %vm990, %v1694, 0
    %2174 = vmatpush.msra.mxu0 0.0
    %2175 = vmatpush.msra.mxu0 0.0
    %2176 = vmatpush.msra.mxu0 0.0
    %2177 = vmatpush.msra.mxu0 0.0
    %2178 = vmatpush.msra.mxu0 0.0
    %2179 = vmatpush.msra.mxu0 0.0
    %2180 = vmatpush.msra.mxu0 0.0
    %2181 = vmatpush.msra.mxu0 0.0
    %2182 = vmatpush.msra.mxu0 0.0
    %2183 = vmatpush.msra.mxu0 0.0
    %2184 = vmatpush.msra.mxu0 0.0
    %2185 = vmatpush.msra.mxu0 0.0
    %2186 = vmatpush.msra.mxu0 0.0
    %2187 = vmatpush.msra.mxu0 0.0
    %2188 = vmatpush.msra.mxu0 %v631
    %2189 = vmatpush.msra.mxu0 %v628
    %2190 = vmatmul.f32.gmra.mxu0 %v2151
    %v2191 = vpop.f32.mrf.mxu0
    %v2192 = vadd.f32 0.0, %v2191
    %2193 = vmatmul.f32.gmra.mxu0 %v2154
    %v2194 = vpop.f32.mrf.mxu0
    %v2195 = vadd.f32 0.0, %v2194
    %2196 = vmatmul.f32.gmra.mxu0 %v2157
    %v2197 = vpop.f32.mrf.mxu0
    %v2198 = vadd.f32 0.0, %v2197
    %2199 = vmatmul.f32.gmra.mxu0 %v2160
    %v2200 = vpop.f32.mrf.mxu0
    %v2201 = vadd.f32 0.0, %v2200
    %2202 = vmatmul.f32.gmra.mxu0 %v2163
    %v2203 = vpop.f32.mrf.mxu0
    %v2204 = vadd.f32 0.0, %v2203
    %2205 = vmatmul.f32.gmra.mxu0 %v2166
    %v2206 = vpop.f32.mrf.mxu0
    %v2207 = vadd.f32 0.0, %v2206
    %2208 = vmatmul.f32.gmra.mxu0 %v2169
    %v2209 = vpop.f32.mrf.mxu0
    %v2210 = vadd.f32 0.0, %v2209
    %2211 = vmatmul.f32.gmra.mxu0 %v2172
    %v2212 = vpop.f32.mrf.mxu0
    %v2213 = vadd.f32 0.0, %v2212
    %2214 = vdwg.mxu0
    %v2215 = vld [vmem:[%s7] sm:$0xff]
    %v2216 = vld [vmem:[%s7 + $0x8] sm:$0xff]
    %v2217 = vld [vmem:[%s7 + $0x10] sm:$0xff]
    %v2218 = vld [vmem:[%s7 + $0x18] sm:$0xff]
    %v2219 = vld [vmem:[%s7 + $0x20] sm:$0xff]
    %v2220 = vld [vmem:[%s7 + $0x28] sm:$0xff]
    %v2221 = vld [vmem:[%s7 + $0x30] sm:$0xff]
    %v2222 = vld [vmem:[%s7 + $0x38] sm:$0xff]
    %v2223 = vmul.f32 %v1737, %v2215
    %v2224 = vmul.f32 %v1740, %v2216
    %v2225 = vmul.f32 %v1743, %v2217
    %v2226 = vmul.f32 %v1746, %v2218
    %v2227 = vmul.f32 %v1749, %v2219
    %v2228 = vmul.f32 %v1752, %v2220
    %v2229 = vmul.f32 %v1755, %v2221
    %v2230 = vmul.f32 %v1758, %v2222
    %v2231 = vmul.f32 %v1802, %v2215
    %v2232 = vmul.f32 %v1805, %v2216
    %v2233 = vmul.f32 %v1808, %v2217
    %v2234 = vmul.f32 %v1811, %v2218
    %v2235 = vmul.f32 %v1814, %v2219
    %v2236 = vmul.f32 %v1817, %v2220
    %v2237 = vmul.f32 %v1820, %v2221
    %v2238 = vmul.f32 %v1823, %v2222
    %v2239 = vmul.f32 %v1867, %v2215
    %v2240 = vmul.f32 %v1870, %v2216
    %v2241 = vmul.f32 %v1873, %v2217
    %v2242 = vmul.f32 %v1876, %v2218
    %v2243 = vmul.f32 %v1879, %v2219
    %v2244 = vmul.f32 %v1882, %v2220
    %v2245 = vmul.f32 %v1885, %v2221
    %v2246 = vmul.f32 %v1888, %v2222
    %v2247 = vmul.f32 %v1932, %v2215
    %v2248 = vmul.f32 %v1935, %v2216
    %v2249 = vmul.f32 %v1938, %v2217
    %v2250 = vmul.f32 %v1941, %v2218
    %v2251 = vmul.f32 %v1944, %v2219
    %v2252 = vmul.f32 %v1947, %v2220
    %v2253 = vmul.f32 %v1950, %v2221
    %v2254 = vmul.f32 %v1953, %v2222
    %v2255 = vmul.f32 %v1997, %v2215
    %v2256 = vmul.f32 %v2000, %v2216
    %v2257 = vmul.f32 %v2003, %v2217
    %v2258 = vmul.f32 %v2006, %v2218
    %v2259 = vmul.f32 %v2009, %v2219
    %v2260 = vmul.f32 %v2012, %v2220
    %v2261 = vmul.f32 %v2015, %v2221
    %v2262 = vmul.f32 %v2018, %v2222
    %v2263 = vmul.f32 %v2062, %v2215
    %v2264 = vmul.f32 %v2065, %v2216
    %v2265 = vmul.f32 %v2068, %v2217
    %v2266 = vmul.f32 %v2071, %v2218
    %v2267 = vmul.f32 %v2074, %v2219
    %v2268 = vmul.f32 %v2077, %v2220
    %v2269 = vmul.f32 %v2080, %v2221
    %v2270 = vmul.f32 %v2083, %v2222
    %v2271 = vmul.f32 %v2127, %v2215
    %v2272 = vmul.f32 %v2130, %v2216
    %v2273 = vmul.f32 %v2133, %v2217
    %v2274 = vmul.f32 %v2136, %v2218
    %v2275 = vmul.f32 %v2139, %v2219
    %v2276 = vmul.f32 %v2142, %v2220
    %v2277 = vmul.f32 %v2145, %v2221
    %v2278 = vmul.f32 %v2148, %v2222
    %v2279 = vmul.f32 %v2192, %v2215
    %v2280 = vmul.f32 %v2195, %v2216
    %v2281 = vmul.f32 %v2198, %v2217
    %v2282 = vmul.f32 %v2201, %v2218
    %v2283 = vmul.f32 %v2204, %v2219
    %v2284 = vmul.f32 %v2207, %v2220
    %v2285 = vmul.f32 %v2210, %v2221
    %v2286 = vmul.f32 %v2213, %v2222
    %v2287 = vadd.f32 %v2223, %v2225
    %v2288 = vadd.f32 %v2287, %v2227
    %v2289 = vadd.f32 %v2288, %v2229
    %v2290 = vadd.f32 %v2224, %v2226
    %v2291 = vadd.f32 %v2290, %v2228
    %v2292 = vadd.f32 %v2291, %v2230
    %v2293 = vadd.f32 %v2231, %v2233
    %v2294 = vadd.f32 %v2293, %v2235
    %v2295 = vadd.f32 %v2294, %v2237
    %v2296 = vadd.f32 %v2232, %v2234
    %v2297 = vadd.f32 %v2296, %v2236
    %v2298 = vadd.f32 %v2297, %v2238
    %v2299 = vadd.f32 %v2239, %v2241
    %v2300 = vadd.f32 %v2299, %v2243
    %v2301 = vadd.f32 %v2300, %v2245
    %v2302 = vadd.f32 %v2240, %v2242
    %v2303 = vadd.f32 %v2302, %v2244
    %v2304 = vadd.f32 %v2303, %v2246
    %v2305 = vadd.f32 %v2247, %v2249
    %v2306 = vadd.f32 %v2305, %v2251
    %v2307 = vadd.f32 %v2306, %v2253
    %v2308 = vadd.f32 %v2248, %v2250
    %v2309 = vadd.f32 %v2308, %v2252
    %v2310 = vadd.f32 %v2309, %v2254
    %v2311 = vadd.f32 %v2255, %v2257
    %v2312 = vadd.f32 %v2311, %v2259
    %v2313 = vadd.f32 %v2312, %v2261
    %v2314 = vadd.f32 %v2256, %v2258
    %v2315 = vadd.f32 %v2314, %v2260
    %v2316 = vadd.f32 %v2315, %v2262
    %v2317 = vadd.f32 %v2263, %v2265
    %v2318 = vadd.f32 %v2317, %v2267
    %v2319 = vadd.f32 %v2318, %v2269
    %v2320 = vadd.f32 %v2264, %v2266
    %v2321 = vadd.f32 %v2320, %v2268
    %v2322 = vadd.f32 %v2321, %v2270
    %v2323 = vadd.f32 %v2271, %v2273
    %v2324 = vadd.f32 %v2323, %v2275
    %v2325 = vadd.f32 %v2324, %v2277
    %v2326 = vadd.f32 %v2272, %v2274
    %v2327 = vadd.f32 %v2326, %v2276
    %v2328 = vadd.f32 %v2327, %v2278
    %v2329 = vadd.f32 %v2279, %v2281
    %v2330 = vadd.f32 %v2329, %v2283
    %v2331 = vadd.f32 %v2330, %v2285
    %v2332 = vadd.f32 %v2280, %v2282
    %v2333 = vadd.f32 %v2332, %v2284
    %v2334 = vadd.f32 %v2333, %v2286
    %v2335 = vld [vmem:[%s8] sm:$0xff]
    %v2336 = vld [vmem:[%s8 + $0x8] sm:$0xff]
    %v2337 = vld [vmem:[%s8 + $0x10] sm:$0xff]
    %v2338 = vld [vmem:[%s8 + $0x18] sm:$0xff]
    %v2339 = vld [vmem:[%s8 + $0x20] sm:$0xff]
    %v2340 = vld [vmem:[%s8 + $0x28] sm:$0xff]
    %v2341 = vld [vmem:[%s8 + $0x30] sm:$0xff]
    %v2342 = vld [vmem:[%s8 + $0x38] sm:$0xff]
    %v2343 = vld [vmem:[%s8 + $0x40] sm:$0xff]
    %v2344 = vld [vmem:[%s8 + $0x48] sm:$0xff]
    %v2345 = vld [vmem:[%s8 + $0x50] sm:$0xff]
    %v2346 = vld [vmem:[%s8 + $0x58] sm:$0xff]
    %v2347 = vld [vmem:[%s8 + $0x60] sm:$0xff]
    %v2348 = vld [vmem:[%s8 + $0x68] sm:$0xff]
    %v2349 = vld [vmem:[%s8 + $0x70] sm:$0xff]
    %v2350 = vld [vmem:[%s8 + $0x78] sm:$0xff]
    %v2351 = vld [vmem:[%s9] sm:$0x1]
    %v2353 = vperm.slane %v2351, 0
    %2355 = vmatpush.xpose.msra.mxu0 %v2350
    %2356 = vmatpush.xpose.msra.mxu0 %v2349
    %2357 = vmatpush.xpose.msra.mxu0 %v2348
    %2358 = vmatpush.xpose.msra.mxu0 %v2347
    %2359 = vmatpush.xpose.msra.mxu0 %v2346
    %2360 = vmatpush.xpose.msra.mxu0 %v2345
    %2361 = vmatpush.xpose.msra.mxu0 %v2344
    %2362 = vmatpush.xpose.msra.mxu0 %v2343
    %2363 = vmatpush.xpose.msra.mxu0 %v2342
    %2364 = vmatpush.xpose.msra.mxu0 %v2341
    %2365 = vmatpush.xpose.msra.mxu0 %v2340
    %2366 = vmatpush.xpose.msra.mxu0 %v2339
    %2367 = vmatpush.xpose.msra.mxu0 %v2338
    %2368 = vmatpush.xpose.msra.mxu0 %v2337
    %2369 = vmatpush.xpose.msra.mxu0 %v2336
    %2370 = vmatpush.xpose.msra.mxu0 %v2335
    %2371 = vmatmul.f32.gmra.mxu0 %v2289
    %v2372 = vpop.f32.mrf.mxu0
    %v2373 = vadd.f32 %v2353, %v2372
    %2374 = vmatmul.f32.gmra.mxu0 %v2292
    %v2375 = vpop.f32.mrf.mxu0
    %v2376 = vadd.f32 %v2353, %v2375
    %2377 = vmatmul.f32.gmra.mxu0 %v2295
    %v2378 = vpop.f32.mrf.mxu0
    %v2379 = vadd.f32 %v2353, %v2378
    %2380 = vmatmul.f32.gmra.mxu0 %v2298
    %v2381 = vpop.f32.mrf.mxu0
    %v2382 = vadd.f32 %v2353, %v2381
    %2383 = vmatmul.f32.gmra.mxu0 %v2301
    %v2384 = vpop.f32.mrf.mxu0
    %v2385 = vadd.f32 %v2353, %v2384
    %2386 = vmatmul.f32.gmra.mxu0 %v2304
    %v2387 = vpop.f32.mrf.mxu0
    %v2388 = vadd.f32 %v2353, %v2387
    %2389 = vmatmul.f32.gmra.mxu0 %v2307
    %v2390 = vpop.f32.mrf.mxu0
    %v2391 = vadd.f32 %v2353, %v2390
    %2392 = vmatmul.f32.gmra.mxu0 %v2310
    %v2393 = vpop.f32.mrf.mxu0
    %v2394 = vadd.f32 %v2353, %v2393
    %2395 = vmatmul.f32.gmra.mxu0 %v2313
    %v2396 = vpop.f32.mrf.mxu0
    %v2397 = vadd.f32 %v2353, %v2396
    %2398 = vmatmul.f32.gmra.mxu0 %v2316
    %v2399 = vpop.f32.mrf.mxu0
    %v2400 = vadd.f32 %v2353, %v2399
    %2401 = vmatmul.f32.gmra.mxu0 %v2319
    %v2402 = vpop.f32.mrf.mxu0
    %v2403 = vadd.f32 %v2353, %v2402
    %2404 = vmatmul.f32.gmra.mxu0 %v2322
    %v2405 = vpop.f32.mrf.mxu0
    %v2406 = vadd.f32 %v2353, %v2405
    %2407 = vmatmul.f32.gmra.mxu0 %v2325
    %v2408 = vpop.f32.mrf.mxu0
    %v2409 = vadd.f32 %v2353, %v2408
    %2410 = vmatmul.f32.gmra.mxu0 %v2328
    %v2411 = vpop.f32.mrf.mxu0
    %v2412 = vadd.f32 %v2353, %v2411
    %2413 = vmatmul.f32.gmra.mxu0 %v2331
    %v2414 = vpop.f32.mrf.mxu0
    %v2415 = vadd.f32 %v2353, %v2414
    %2416 = vmatmul.f32.gmra.mxu0 %v2334
    %v2417 = vpop.f32.mrf.mxu0
    %v2418 = vadd.f32 %v2353, %v2417
    %2419 = vdwg.mxu0
    %2420 = vst [vmem:[#allocation2] sm:$0xff] %v2373
    %2421 = vst [vmem:[#allocation2 + $0x8] sm:$0xff] %v2376
    %2422 = vst [vmem:[#allocation2 + $0x10] sm:$0xff] %v2379
    %2423 = vst [vmem:[#allocation2 + $0x18] sm:$0xff] %v2382
    %2424 = vst [vmem:[#allocation2 + $0x20] sm:$0xff] %v2385
    %2425 = vst [vmem:[#allocation2 + $0x28] sm:$0xff] %v2388
    %2426 = vst [vmem:[#allocation2 + $0x30] sm:$0xff] %v2391
    %2427 = vst [vmem:[#allocation2 + $0x38] sm:$0xff] %v2394
    %2428 = vst [vmem:[#allocation2 + $0x40] sm:$0xff] %v2397
    %2429 = vst [vmem:[#allocation2 + $0x48] sm:$0xff] %v2400
    %2430 = vst [vmem:[#allocation2 + $0x50] sm:$0xff] %v2403
    %2431 = vst [vmem:[#allocation2 + $0x58] sm:$0xff] %v2406
    %2432 = vst [vmem:[#allocation2 + $0x60] sm:$0xff] %v2409
    %2433 = vst [vmem:[#allocation2 + $0x68] sm:$0xff] %v2412
    %2434 = vst [vmem:[#allocation2 + $0x70] sm:$0xff] %v2415
    %2435 = vst [vmem:[#allocation2 + $0x78] sm:$0xff] %v2418
    // Predicated region
    $region42: #{attentional_pooler_pallas.1} parent=1 // pred_check
      _
    $region43: #{attentional_pooler_pallas.1} parent=1 // pred_check_branch
      %2437 = sbr.rel (0) target = $region45
    $region44: #{attentional_pooler_pallas.1} parent=1 // pred_region
      %2439 = vsyncadd [#allocation3], 0
      %s2440 = sshll.u32 [#allocation2], 4
      %s2441 = int_to_ptr.vmem [resolvable:$true] %s2440
      %s2442 = sshll.u32 %s10, 4
      %s2443 = int_to_ptr.hbm [resolvable:$true] %s2442
      %2448 = dma.vmem_to_hbm [thread:$0]  %s2441, 2048, %s2443, [#allocation3], 128, 128, 8
    $region45: #{attentional_pooler_pallas.1} parent=1 // pred_fallthru
      _
    // Predicated region
    $region46: #{attentional_pooler_pallas.1} parent=1 // pred_check
      _
    $region47: #{attentional_pooler_pallas.1} parent=1 // pred_check_branch
      %2450 = sbr.rel (0) target = $region49
    $region48: #{attentional_pooler_pallas.1} parent=1 // pred_region
      %2452 = dma.done [#allocation3], 2048
    $region49: #{attentional_pooler_pallas.1} parent=1 // pred_fallthru
      _
    %2453 = vsyncpa [#allocation3], 1

</llo_original>
